<compile_context>
chip_gen: v7x
topology: tpu7x:2x2x1
jax: 0.10.0
libtpu: 0.0.40
codegen_flags: <defaults>
</compile_context>

<pallas_src>
import functools

import jax
import jax.numpy as jnp
from jax.experimental import pallas as pl
from jax.experimental.pallas import tpu as pltpu


LANE = 128  # TPU lane width; hidden/output widths are zero-padded to this.


def _round_up(n, m):
    return ((n + m - 1) // m) * m


def _leaky_relu(x, slope):
    return jnp.where(x > 0, x, slope * x)


def _relu(x):
    return jnp.maximum(x, 0.0)


# ---------------------------------------------------------------------------
# Kernel
# ---------------------------------------------------------------------------
def feedforward_kernel(
    x_ref,
    w1, b1, w2, b2, w3, b3, w4, b4, w5, b5, w6, b6, w7, b7, w8, b8, w9, b9,
    out_ref,
    *,
    negative_slope,
):
    """One (block_m, in_features) tile of x -> one (block_m, LANE) output tile.

    Weights/biases are whole-array VMEM residents (constant index_map), so the
    only per-grid-step DMA traffic is the x tile in and the output tile out.
    """
    h = x_ref[...]  # f32 activations

    def lin(h, w_ref, b_ref):
        # Feed the MXU in the weight dtype (f32 or bf16) with f32 accumulation;
        # bias add and activations stay f32.
        acc = jnp.dot(
            h.astype(w_ref.dtype), w_ref[...],
            preferred_element_type=jnp.float32,
        )
        return acc + b_ref[...]

    h = _leaky_relu(lin(h, w1, b1), negative_slope)
    h = _relu(lin(h, w2, b2))
    h = _leaky_relu(lin(h, w3, b3), negative_slope)
    h = _relu(lin(h, w4, b4))
    h = _leaky_relu(lin(h, w5, b5), negative_slope)
    h = _relu(lin(h, w6, b6))
    h = _leaky_relu(lin(h, w7, b7), negative_slope)
    h = _relu(lin(h, w8, b8))
    h = lin(h, w9, b9)  # fc9: no activation; padded to LANE lanes (lane-dense store)

    out_ref[...] = h.astype(out_ref.dtype)


# ---------------------------------------------------------------------------
# One-time parameter preparation (hoisted out of the traced call path)
# ---------------------------------------------------------------------------
def prepare_params(params, weight_dtype=jnp.float32):
    """Transpose-layout / zero-pad / cast nn.Linear params once.

    params: list of 9 (W, b) pairs with W: (in, out) (already (in, out) layout,
            i.e. the transpose of torch's (out, in)), b: (out,).
    Returns (flat, layer_dims):
      flat       = [w1, b1, ..., w9, b9] with every out-dim zero-padded to a
                   multiple of LANE (and each subsequent in-dim padded to match),
                   weights cast to `weight_dtype`, biases kept f32 as (1, out_pad).
      layer_dims = [(in_pad, out_pad), ...] padded dims per layer (for cost est.).
    """
    flat = []
    layer_dims = []
    prev_out_pad = None
    for idx, (w, b) in enumerate(params):
        fan_in, fan_out = w.shape
        in_pad = fan_in if idx == 0 else prev_out_pad
        out_pad = _round_up(fan_out, LANE)

        w_p = jnp.zeros((in_pad, out_pad), jnp.float32)
        w_p = w_p.at[:fan_in, :fan_out].set(w.astype(jnp.float32))
        b_p = jnp.zeros((1, out_pad), jnp.float32)
        b_p = b_p.at[0, :fan_out].set(b.astype(jnp.float32))

        flat.append(w_p.astype(weight_dtype))
        flat.append(b_p)  # bias stays f32
        layer_dims.append((in_pad, out_pad))
        prev_out_pad = out_pad
    return flat, layer_dims


# ---------------------------------------------------------------------------
# Wrapper
# ---------------------------------------------------------------------------
def feedforward_pallas(x, prepared, layer_dims, negative_slope=0.01, block_m=512):
    """x: (batch, input_size) f32. prepared/layer_dims from prepare_params()."""
    batch, in_features = x.shape
    out_pad = layer_dims[-1][1]
    out_true = 1  # module ends in nn.Linear(hidden8, 1)

    block_m = min(block_m, batch)
    if block_m != batch:
        block_m = max(8, (block_m // 8) * 8)  # sublane-aligned batch tile
    grid = (pl.cdiv(batch, block_m),)

    in_specs = [pl.BlockSpec((block_m, in_features), lambda i: (i, 0))]
    for arr in prepared:
        # Weights/biases: constant index map -> resident in VMEM across steps.
        in_specs.append(pl.BlockSpec(arr.shape, lambda i: (0, 0)))
    out_specs = pl.BlockSpec((block_m, out_pad), lambda i: (i, 0))

    flops = 2 * batch * sum(k * n for k, n in layer_dims)
    bytes_accessed = (
        x.size * x.dtype.itemsize
        + sum(int(a.size) * a.dtype.itemsize for a in prepared)
        + batch * out_pad * 4
    )
    cost = pl.CostEstimate(
        flops=int(flops), transcendentals=0, bytes_accessed=int(bytes_accessed)
    )

    kernel = functools.partial(feedforward_kernel, negative_slope=negative_slope)

    out_padded = pl.pallas_call(
        kernel,
        out_shape=jax.ShapeDtypeStruct((batch, out_pad), jnp.float32),
        grid=grid,
        in_specs=in_specs,
        out_specs=out_specs,
        compiler_params=pltpu.CompilerParams(
            dimension_semantics=("parallel",),  # megacore sharding on v7x
        ),
        cost_estimate=cost,
    )(x, *prepared)

    return out_padded[:, :out_true]


# ---------------------------------------------------------------------------
# Init + references
# ---------------------------------------------------------------------------
def init_params(key, sizes):
    """Mimics PyTorch Linear init (uniform +-1/sqrt(fan_in)); W stored as (in, out)."""
    params = []
    for i in range(len(sizes) - 1):
        fan_in, fan_out = sizes[i], sizes[i + 1]
        key, kw, kb = jax.random.split(key, 3)
        bound = 1.0 / jnp.sqrt(jnp.float32(fan_in))
        w = jax.random.uniform(kw, (fan_in, fan_out), jnp.float32, -bound, bound)
        b = jax.random.uniform(kb, (fan_out,), jnp.float32, -bound, bound)
        params.append((w, b))
    return params


def feedforward_ref(x, params, negative_slope=0.01):
    """Pure-JAX f32 reference matching the PyTorch module."""
    h = x
    acts = [
        lambda z: jnp.where(z > 0, z, negative_slope * z),  # leaky
        lambda z: jnp.maximum(z, 0.0),                      # relu
    ]
    for i, (w, b) in enumerate(params[:-1]):
        h = acts[i % 2](h @ w + b)
    w, b = params[-1]
    return h @ w + b


def feedforward_ref_lowp(x, params, negative_slope, weight_dtype):
    """Reference mimicking the kernel's low-precision-input / f32-accumulate math."""
    h = x.astype(jnp.float32)
    acts = [
        lambda z: jnp.where(z > 0, z, negative_slope * z),
        lambda z: jnp.maximum(z, 0.0),
    ]
    n = len(params)
    for i, (w, b) in enumerate(params):
        acc = jnp.dot(
            h.astype(weight_dtype), w.astype(weight_dtype),
            preferred_element_type=jnp.float32,
        ) + b.astype(jnp.float32)
        h = acc if i == n - 1 else acts[i % 2](acc)
    return h


# ---------------------------------------------------------------------------
if __name__ == "__main__":
    key = jax.random.PRNGKey(0)

    # Small, module-consistent shapes (batch big enough to exercise the grid).
    batch = 256
    input_size = 32
    hidden = [64, 64, 32, 32, 64, 64, 32, 32]
    sizes = [input_size] + hidden + [1]
    negative_slope = 0.01

    key, kx = jax.random.split(key)
    x = jax.random.normal(kx, (batch, input_size), jnp.float32)
    params = init_params(key, sizes)

    # --- f32 weights: exact semantics of the PyTorch module -------------------
    prep_f32, dims = prepare_params(params, weight_dtype=jnp.float32)
    out = jax.block_until_ready(
        feedforward_pallas(x, prep_f32, dims, negative_slope, block_m=128)
    )
    ref = feedforward_ref(x, params, negative_slope)
    assert out.shape == (batch, 1)
    assert jnp.allclose(out, ref, atol=1e-4, rtol=1e-4), "f32 mismatch vs reference"

    # --- bf16 weights fed to the MXU (f32 accumulation) ------------------------
    prep_bf16, dims_b = prepare_params(params, weight_dtype=jnp.bfloat16)
    out_bf16 = jax.block_until_ready(
        feedforward_pallas(x, prep_bf16, dims_b, negative_slope, block_m=128)
    )
    ref_bf16 = feedforward_ref_lowp(x, params, negative_slope, jnp.bfloat16)
    assert out_bf16.shape == (batch, 1)
    assert jnp.allclose(out_bf16, ref_bf16, atol=1e-2, rtol=1e-2), "bf16 path mismatch"

    print("KERNEL_OK")
</pallas_src>

<mosaic_0001>
module attributes {stable_mosaic.version = 11 : i64} {
  func.func @feedforward_kernel(%arg0: i32, %arg1: memref<128x32xf32, #tpu.memory_space<vmem>>, %arg2: memref<32x128xf32, #tpu.memory_space<vmem>>, %arg3: memref<1x128xf32, #tpu.memory_space<vmem>>, %arg4: memref<128x128xf32, #tpu.memory_space<vmem>>, %arg5: memref<1x128xf32, #tpu.memory_space<vmem>>, %arg6: memref<128x128xf32, #tpu.memory_space<vmem>>, %arg7: memref<1x128xf32, #tpu.memory_space<vmem>>, %arg8: memref<128x128xf32, #tpu.memory_space<vmem>>, %arg9: memref<1x128xf32, #tpu.memory_space<vmem>>, %arg10: memref<128x128xf32, #tpu.memory_space<vmem>>, %arg11: memref<1x128xf32, #tpu.memory_space<vmem>>, %arg12: memref<128x128xf32, #tpu.memory_space<vmem>>, %arg13: memref<1x128xf32, #tpu.memory_space<vmem>>, %arg14: memref<128x128xf32, #tpu.memory_space<vmem>>, %arg15: memref<1x128xf32, #tpu.memory_space<vmem>>, %arg16: memref<128x128xf32, #tpu.memory_space<vmem>>, %arg17: memref<1x128xf32, #tpu.memory_space<vmem>>, %arg18: memref<128x128xf32, #tpu.memory_space<vmem>>, %arg19: memref<1x128xf32, #tpu.memory_space<vmem>>, %arg20: memref<128x128xf32, #tpu.memory_space<vmem>>) attributes {dimension_semantics = [#tpu.dimension_semantics<parallel>], iteration_bounds = array<i64: 2>, scalar_prefetch = 0 : i64, scratch_operands = 0 : i64, tpu.core_type = #tpu.core_type<tc>, window_params = [{transform_indices = @transform_0, window_bounds = array<i64: 128, 32>}, {pipeline_mode = #tpu.pipeline_mode<synchronous>, transform_indices = @transform_1, window_bounds = array<i64: 32, 128>}, {pipeline_mode = #tpu.pipeline_mode<synchronous>, transform_indices = @transform_2, window_bounds = array<i64: 1, 128>}, {pipeline_mode = #tpu.pipeline_mode<synchronous>, transform_indices = @transform_3, window_bounds = array<i64: 128, 128>}, {pipeline_mode = #tpu.pipeline_mode<synchronous>, transform_indices = @transform_4, window_bounds = array<i64: 1, 128>}, {pipeline_mode = #tpu.pipeline_mode<synchronous>, transform_indices = @transform_5, window_bounds = array<i64: 128, 128>}, {pipeline_mode = #tpu.pipeline_mode<synchronous>, transform_indices = @transform_6, window_bounds = array<i64: 1, 128>}, {pipeline_mode = #tpu.pipeline_mode<synchronous>, transform_indices = @transform_7, window_bounds = array<i64: 128, 128>}, {pipeline_mode = #tpu.pipeline_mode<synchronous>, transform_indices = @transform_8, window_bounds = array<i64: 1, 128>}, {pipeline_mode = #tpu.pipeline_mode<synchronous>, transform_indices = @transform_9, window_bounds = array<i64: 128, 128>}, {pipeline_mode = #tpu.pipeline_mode<synchronous>, transform_indices = @transform_10, window_bounds = array<i64: 1, 128>}, {pipeline_mode = #tpu.pipeline_mode<synchronous>, transform_indices = @transform_11, window_bounds = array<i64: 128, 128>}, {pipeline_mode = #tpu.pipeline_mode<synchronous>, transform_indices = @transform_12, window_bounds = array<i64: 1, 128>}, {pipeline_mode = #tpu.pipeline_mode<synchronous>, transform_indices = @transform_13, window_bounds = array<i64: 128, 128>}, {pipeline_mode = #tpu.pipeline_mode<synchronous>, transform_indices = @transform_14, window_bounds = array<i64: 1, 128>}, {pipeline_mode = #tpu.pipeline_mode<synchronous>, transform_indices = @transform_15, window_bounds = array<i64: 128, 128>}, {pipeline_mode = #tpu.pipeline_mode<synchronous>, transform_indices = @transform_16, window_bounds = array<i64: 1, 128>}, {pipeline_mode = #tpu.pipeline_mode<synchronous>, transform_indices = @transform_17, window_bounds = array<i64: 128, 128>}, {pipeline_mode = #tpu.pipeline_mode<synchronous>, transform_indices = @transform_18, window_bounds = array<i64: 1, 128>}, {transform_indices = @transform_19, window_bounds = array<i64: 128, 128>}]} {
    %c0 = arith.constant 0 : index
    %c0_0 = arith.constant 0 : index
    %0 = vector.load %arg1[%c0, %c0_0] : memref<128x32xf32, #tpu.memory_space<vmem>>, vector<128x32xf32>
    %c0_1 = arith.constant 0 : index
    %c0_2 = arith.constant 0 : index
    %1 = vector.load %arg2[%c0_1, %c0_2] : memref<32x128xf32, #tpu.memory_space<vmem>>, vector<32x128xf32>
    %cst = arith.constant dense<0.000000e+00> : vector<128x128xf32>
    %2 = tpu.matmul %0, %1, %cst {dimension_numbers = #tpu.dot_dimension_numbers<[1], [0], [0], [1], [0, 0, 1, 1], [], []>} : vector<128x32xf32>, vector<32x128xf32>, vector<128x128xf32> -> vector<128x128xf32>
    %c0_3 = arith.constant 0 : index
    %c0_4 = arith.constant 0 : index
    %3 = vector.load %arg3[%c0_3, %c0_4] : memref<1x128xf32, #tpu.memory_space<vmem>>, vector<1x128xf32>
    %4 = vector.broadcast %3 : vector<1x128xf32> to vector<128x128xf32>
    %5 = arith.addf %2, %4 : vector<128x128xf32>
    %cst_5 = arith.constant 0.000000e+00 : f32
    %6 = vector.broadcast %cst_5 : f32 to vector<128x128xf32>
    %7 = arith.cmpf ogt, %5, %6 : vector<128x128xf32>
    %cst_6 = arith.constant 0.00999999977 : f32
    %8 = vector.broadcast %cst_6 : f32 to vector<128x128xf32>
    %9 = arith.mulf %8, %5 : vector<128x128xf32>
    %10 = arith.select %7, %5, %9 : vector<128x128xi1>, vector<128x128xf32>
    %c0_7 = arith.constant 0 : index
    %c0_8 = arith.constant 0 : index
    %11 = vector.load %arg4[%c0_7, %c0_8] : memref<128x128xf32, #tpu.memory_space<vmem>>, vector<128x128xf32>
    %cst_9 = arith.constant dense<0.000000e+00> : vector<128x128xf32>
    %12 = tpu.matmul %10, %11, %cst_9 {dimension_numbers = #tpu.dot_dimension_numbers<[1], [0], [0], [1], [0, 0, 1, 1], [], []>} : vector<128x128xf32>, vector<128x128xf32>, vector<128x128xf32> -> vector<128x128xf32>
    %c0_10 = arith.constant 0 : index
    %c0_11 = arith.constant 0 : index
    %13 = vector.load %arg5[%c0_10, %c0_11] : memref<1x128xf32, #tpu.memory_space<vmem>>, vector<1x128xf32>
    %14 = vector.broadcast %13 : vector<1x128xf32> to vector<128x128xf32>
    %15 = arith.addf %12, %14 : vector<128x128xf32>
    %cst_12 = arith.constant 0.000000e+00 : f32
    %16 = vector.broadcast %cst_12 : f32 to vector<128x128xf32>
    %17 = arith.maximumf %15, %16 : vector<128x128xf32>
    %c0_13 = arith.constant 0 : index
    %c0_14 = arith.constant 0 : index
    %18 = vector.load %arg6[%c0_13, %c0_14] : memref<128x128xf32, #tpu.memory_space<vmem>>, vector<128x128xf32>
    %cst_15 = arith.constant dense<0.000000e+00> : vector<128x128xf32>
    %19 = tpu.matmul %17, %18, %cst_15 {dimension_numbers = #tpu.dot_dimension_numbers<[1], [0], [0], [1], [0, 0, 1, 1], [], []>} : vector<128x128xf32>, vector<128x128xf32>, vector<128x128xf32> -> vector<128x128xf32>
    %c0_16 = arith.constant 0 : index
    %c0_17 = arith.constant 0 : index
    %20 = vector.load %arg7[%c0_16, %c0_17] : memref<1x128xf32, #tpu.memory_space<vmem>>, vector<1x128xf32>
    %21 = vector.broadcast %20 : vector<1x128xf32> to vector<128x128xf32>
    %22 = arith.addf %19, %21 : vector<128x128xf32>
    %cst_18 = arith.constant 0.000000e+00 : f32
    %23 = vector.broadcast %cst_18 : f32 to vector<128x128xf32>
    %24 = arith.cmpf ogt, %22, %23 : vector<128x128xf32>
    %cst_19 = arith.constant 0.00999999977 : f32
    %25 = vector.broadcast %cst_19 : f32 to vector<128x128xf32>
    %26 = arith.mulf %25, %22 : vector<128x128xf32>
    %27 = arith.select %24, %22, %26 : vector<128x128xi1>, vector<128x128xf32>
    %c0_20 = arith.constant 0 : index
    %c0_21 = arith.constant 0 : index
    %28 = vector.load %arg8[%c0_20, %c0_21] : memref<128x128xf32, #tpu.memory_space<vmem>>, vector<128x128xf32>
    %cst_22 = arith.constant dense<0.000000e+00> : vector<128x128xf32>
    %29 = tpu.matmul %27, %28, %cst_22 {dimension_numbers = #tpu.dot_dimension_numbers<[1], [0], [0], [1], [0, 0, 1, 1], [], []>} : vector<128x128xf32>, vector<128x128xf32>, vector<128x128xf32> -> vector<128x128xf32>
    %c0_23 = arith.constant 0 : index
    %c0_24 = arith.constant 0 : index
    %30 = vector.load %arg9[%c0_23, %c0_24] : memref<1x128xf32, #tpu.memory_space<vmem>>, vector<1x128xf32>
    %31 = vector.broadcast %30 : vector<1x128xf32> to vector<128x128xf32>
    %32 = arith.addf %29, %31 : vector<128x128xf32>
    %cst_25 = arith.constant 0.000000e+00 : f32
    %33 = vector.broadcast %cst_25 : f32 to vector<128x128xf32>
    %34 = arith.maximumf %32, %33 : vector<128x128xf32>
    %c0_26 = arith.constant 0 : index
    %c0_27 = arith.constant 0 : index
    %35 = vector.load %arg10[%c0_26, %c0_27] : memref<128x128xf32, #tpu.memory_space<vmem>>, vector<128x128xf32>
    %cst_28 = arith.constant dense<0.000000e+00> : vector<128x128xf32>
    %36 = tpu.matmul %34, %35, %cst_28 {dimension_numbers = #tpu.dot_dimension_numbers<[1], [0], [0], [1], [0, 0, 1, 1], [], []>} : vector<128x128xf32>, vector<128x128xf32>, vector<128x128xf32> -> vector<128x128xf32>
    %c0_29 = arith.constant 0 : index
    %c0_30 = arith.constant 0 : index
    %37 = vector.load %arg11[%c0_29, %c0_30] : memref<1x128xf32, #tpu.memory_space<vmem>>, vector<1x128xf32>
    %38 = vector.broadcast %37 : vector<1x128xf32> to vector<128x128xf32>
    %39 = arith.addf %36, %38 : vector<128x128xf32>
    %cst_31 = arith.constant 0.000000e+00 : f32
    %40 = vector.broadcast %cst_31 : f32 to vector<128x128xf32>
    %41 = arith.cmpf ogt, %39, %40 : vector<128x128xf32>
    %cst_32 = arith.constant 0.00999999977 : f32
    %42 = vector.broadcast %cst_32 : f32 to vector<128x128xf32>
    %43 = arith.mulf %42, %39 : vector<128x128xf32>
    %44 = arith.select %41, %39, %43 : vector<128x128xi1>, vector<128x128xf32>
    %c0_33 = arith.constant 0 : index
    %c0_34 = arith.constant 0 : index
    %45 = vector.load %arg12[%c0_33, %c0_34] : memref<128x128xf32, #tpu.memory_space<vmem>>, vector<128x128xf32>
    %cst_35 = arith.constant dense<0.000000e+00> : vector<128x128xf32>
    %46 = tpu.matmul %44, %45, %cst_35 {dimension_numbers = #tpu.dot_dimension_numbers<[1], [0], [0], [1], [0, 0, 1, 1], [], []>} : vector<128x128xf32>, vector<128x128xf32>, vector<128x128xf32> -> vector<128x128xf32>
    %c0_36 = arith.constant 0 : index
    %c0_37 = arith.constant 0 : index
    %47 = vector.load %arg13[%c0_36, %c0_37] : memref<1x128xf32, #tpu.memory_space<vmem>>, vector<1x128xf32>
    %48 = vector.broadcast %47 : vector<1x128xf32> to vector<128x128xf32>
    %49 = arith.addf %46, %48 : vector<128x128xf32>
    %cst_38 = arith.constant 0.000000e+00 : f32
    %50 = vector.broadcast %cst_38 : f32 to vector<128x128xf32>
    %51 = arith.maximumf %49, %50 : vector<128x128xf32>
    %c0_39 = arith.constant 0 : index
    %c0_40 = arith.constant 0 : index
    %52 = vector.load %arg14[%c0_39, %c0_40] : memref<128x128xf32, #tpu.memory_space<vmem>>, vector<128x128xf32>
    %cst_41 = arith.constant dense<0.000000e+00> : vector<128x128xf32>
    %53 = tpu.matmul %51, %52, %cst_41 {dimension_numbers = #tpu.dot_dimension_numbers<[1], [0], [0], [1], [0, 0, 1, 1], [], []>} : vector<128x128xf32>, vector<128x128xf32>, vector<128x128xf32> -> vector<128x128xf32>
    %c0_42 = arith.constant 0 : index
    %c0_43 = arith.constant 0 : index
    %54 = vector.load %arg15[%c0_42, %c0_43] : memref<1x128xf32, #tpu.memory_space<vmem>>, vector<1x128xf32>
    %55 = vector.broadcast %54 : vector<1x128xf32> to vector<128x128xf32>
    %56 = arith.addf %53, %55 : vector<128x128xf32>
    %cst_44 = arith.constant 0.000000e+00 : f32
    %57 = vector.broadcast %cst_44 : f32 to vector<128x128xf32>
    %58 = arith.cmpf ogt, %56, %57 : vector<128x128xf32>
    %cst_45 = arith.constant 0.00999999977 : f32
    %59 = vector.broadcast %cst_45 : f32 to vector<128x128xf32>
    %60 = arith.mulf %59, %56 : vector<128x128xf32>
    %61 = arith.select %58, %56, %60 : vector<128x128xi1>, vector<128x128xf32>
    %c0_46 = arith.constant 0 : index
    %c0_47 = arith.constant 0 : index
    %62 = vector.load %arg16[%c0_46, %c0_47] : memref<128x128xf32, #tpu.memory_space<vmem>>, vector<128x128xf32>
    %cst_48 = arith.constant dense<0.000000e+00> : vector<128x128xf32>
    %63 = tpu.matmul %61, %62, %cst_48 {dimension_numbers = #tpu.dot_dimension_numbers<[1], [0], [0], [1], [0, 0, 1, 1], [], []>} : vector<128x128xf32>, vector<128x128xf32>, vector<128x128xf32> -> vector<128x128xf32>
    %c0_49 = arith.constant 0 : index
    %c0_50 = arith.constant 0 : index
    %64 = vector.load %arg17[%c0_49, %c0_50] : memref<1x128xf32, #tpu.memory_space<vmem>>, vector<1x128xf32>
    %65 = vector.broadcast %64 : vector<1x128xf32> to vector<128x128xf32>
    %66 = arith.addf %63, %65 : vector<128x128xf32>
    %cst_51 = arith.constant 0.000000e+00 : f32
    %67 = vector.broadcast %cst_51 : f32 to vector<128x128xf32>
    %68 = arith.maximumf %66, %67 : vector<128x128xf32>
    %c0_52 = arith.constant 0 : index
    %c0_53 = arith.constant 0 : index
    %69 = vector.load %arg18[%c0_52, %c0_53] : memref<128x128xf32, #tpu.memory_space<vmem>>, vector<128x128xf32>
    %cst_54 = arith.constant dense<0.000000e+00> : vector<128x128xf32>
    %70 = tpu.matmul %68, %69, %cst_54 {dimension_numbers = #tpu.dot_dimension_numbers<[1], [0], [0], [1], [0, 0, 1, 1], [], []>} : vector<128x128xf32>, vector<128x128xf32>, vector<128x128xf32> -> vector<128x128xf32>
    %c0_55 = arith.constant 0 : index
    %c0_56 = arith.constant 0 : index
    %71 = vector.load %arg19[%c0_55, %c0_56] : memref<1x128xf32, #tpu.memory_space<vmem>>, vector<1x128xf32>
    %72 = vector.broadcast %71 : vector<1x128xf32> to vector<128x128xf32>
    %73 = arith.addf %70, %72 : vector<128x128xf32>
    %c0_57 = arith.constant 0 : index
    %c0_58 = arith.constant 0 : index
    %74 = vector.load %arg20[%c0_57, %c0_58] : memref<128x128xf32, #tpu.memory_space<vmem>>, vector<128x128xf32>
    tpu.vector_store %arg20[%c0_57, %c0_58], %73 {strides = array<i32>} : memref<128x128xf32, #tpu.memory_space<vmem>>, vector<128x128xf32>,
    return
  }
  func.func @transform_0(%arg0: i32) -> (i32, i32) {
    %c0_i32 = arith.constant 0 : i32
    %c0_i32_0 = arith.constant 0 : i32
    return %arg0, %c0_i32 : i32, i32
  }
  func.func @transform_1(%arg0: i32) -> (i32, i32) {
    %c0_i32 = arith.constant 0 : i32
    %c0_i32_0 = arith.constant 0 : i32
    %c0_i32_1 = arith.constant 0 : i32
    return %c0_i32, %c0_i32_0 : i32, i32
  }
  func.func @transform_2(%arg0: i32) -> (i32, i32) {
    %c0_i32 = arith.constant 0 : i32
    %c0_i32_0 = arith.constant 0 : i32
    %c0_i32_1 = arith.constant 0 : i32
    return %c0_i32, %c0_i32_0 : i32, i32
  }
  func.func @transform_3(%arg0: i32) -> (i32, i32) {
    %c0_i32 = arith.constant 0 : i32
    %c0_i32_0 = arith.constant 0 : i32
    %c0_i32_1 = arith.constant 0 : i32
    return %c0_i32, %c0_i32_0 : i32, i32
  }
  func.func @transform_4(%arg0: i32) -> (i32, i32) {
    %c0_i32 = arith.constant 0 : i32
    %c0_i32_0 = arith.constant 0 : i32
    %c0_i32_1 = arith.constant 0 : i32
    return %c0_i32, %c0_i32_0 : i32, i32
  }
  func.func @transform_5(%arg0: i32) -> (i32, i32) {
    %c0_i32 = arith.constant 0 : i32
    %c0_i32_0 = arith.constant 0 : i32
    %c0_i32_1 = arith.constant 0 : i32
    return %c0_i32, %c0_i32_0 : i32, i32
  }
  func.func @transform_6(%arg0: i32) -> (i32, i32) {
    %c0_i32 = arith.constant 0 : i32
    %c0_i32_0 = arith.constant 0 : i32
    %c0_i32_1 = arith.constant 0 : i32
    return %c0_i32, %c0_i32_0 : i32, i32
  }
  func.func @transform_7(%arg0: i32) -> (i32, i32) {
    %c0_i32 = arith.constant 0 : i32
    %c0_i32_0 = arith.constant 0 : i32
    %c0_i32_1 = arith.constant 0 : i32
    return %c0_i32, %c0_i32_0 : i32, i32
  }
  func.func @transform_8(%arg0: i32) -> (i32, i32) {
    %c0_i32 = arith.constant 0 : i32
    %c0_i32_0 = arith.constant 0 : i32
    %c0_i32_1 = arith.constant 0 : i32
    return %c0_i32, %c0_i32_0 : i32, i32
  }
  func.func @transform_9(%arg0: i32) -> (i32, i32) {
    %c0_i32 = arith.constant 0 : i32
    %c0_i32_0 = arith.constant 0 : i32
    %c0_i32_1 = arith.constant 0 : i32
    return %c0_i32, %c0_i32_0 : i32, i32
  }
  func.func @transform_10(%arg0: i32) -> (i32, i32) {
    %c0_i32 = arith.constant 0 : i32
    %c0_i32_0 = arith.constant 0 : i32
    %c0_i32_1 = arith.constant 0 : i32
    return %c0_i32, %c0_i32_0 : i32, i32
  }
  func.func @transform_11(%arg0: i32) -> (i32, i32) {
    %c0_i32 = arith.constant 0 : i32
    %c0_i32_0 = arith.constant 0 : i32
    %c0_i32_1 = arith.constant 0 : i32
    return %c0_i32, %c0_i32_0 : i32, i32
  }
  func.func @transform_12(%arg0: i32) -> (i32, i32) {
    %c0_i32 = arith.constant 0 : i32
    %c0_i32_0 = arith.constant 0 : i32
    %c0_i32_1 = arith.constant 0 : i32
    return %c0_i32, %c0_i32_0 : i32, i32
  }
  func.func @transform_13(%arg0: i32) -> (i32, i32) {
    %c0_i32 = arith.constant 0 : i32
    %c0_i32_0 = arith.constant 0 : i32
    %c0_i32_1 = arith.constant 0 : i32
    return %c0_i32, %c0_i32_0 : i32, i32
  }
  func.func @transform_14(%arg0: i32) -> (i32, i32) {
    %c0_i32 = arith.constant 0 : i32
    %c0_i32_0 = arith.constant 0 : i32
    %c0_i32_1 = arith.constant 0 : i32
    return %c0_i32, %c0_i32_0 : i32, i32
  }
  func.func @transform_15(%arg0: i32) -> (i32, i32) {
    %c0_i32 = arith.constant 0 : i32
    %c0_i32_0 = arith.constant 0 : i32
    %c0_i32_1 = arith.constant 0 : i32
    return %c0_i32, %c0_i32_0 : i32, i32
  }
  func.func @transform_16(%arg0: i32) -> (i32, i32) {
    %c0_i32 = arith.constant 0 : i32
    %c0_i32_0 = arith.constant 0 : i32
    %c0_i32_1 = arith.constant 0 : i32
    return %c0_i32, %c0_i32_0 : i32, i32
  }
  func.func @transform_17(%arg0: i32) -> (i32, i32) {
    %c0_i32 = arith.constant 0 : i32
    %c0_i32_0 = arith.constant 0 : i32
    %c0_i32_1 = arith.constant 0 : i32
    return %c0_i32, %c0_i32_0 : i32, i32
  }
  func.func @transform_18(%arg0: i32) -> (i32, i32) {
    %c0_i32 = arith.constant 0 : i32
    %c0_i32_0 = arith.constant 0 : i32
    %c0_i32_1 = arith.constant 0 : i32
    return %c0_i32, %c0_i32_0 : i32, i32
  }
  func.func @transform_19(%arg0: i32) -> (i32, i32) {
    %c0_i32 = arith.constant 0 : i32
    %c0_i32_0 = arith.constant 0 : i32
    return %arg0, %c0_i32 : i32, i32
  }
}

</mosaic_0001>

<llo_original>
// kernel: tpu_custom_call.1
$region0: #{tpu_custom_call.1}
  #allocation0 [shape = 'u32[]', space=smem, size = 0x4, offset = 0x4, fixed_abs, tag = 'smem constant byte address 0x4 - core index']
  #allocation1 [shape = 'u32[144,128]{1,0:T(1,128)}', space=vmem, size = 0x12000, scoped, tag = 'internal scratch']
  %s0 = inlined_call_operand.vmem [shape: f32[256,32], index: 0, kind: input, shape index: {}]
  %s1 = inlined_call_operand.vmem [shape: f32[32,128], index: 1, kind: input, shape index: {}]
  %s2 = inlined_call_operand.vmem [shape: f32[1,128], index: 2, kind: input, shape index: {}]
  %s3 = inlined_call_operand.vmem [shape: f32[128,128], index: 3, kind: input, shape index: {}]
  %s4 = inlined_call_operand.vmem [shape: f32[1,128], index: 4, kind: input, shape index: {}]
  %s5 = inlined_call_operand.vmem [shape: f32[128,128], index: 5, kind: input, shape index: {}]
  %s6 = inlined_call_operand.vmem [shape: f32[1,128], index: 6, kind: input, shape index: {}]
  %s7 = inlined_call_operand.hbm [shape: f32[128,128], index: 7, kind: input, shape index: {}]
  %s8 = inlined_call_operand.vmem [shape: f32[1,128], index: 8, kind: input, shape index: {}]
  %s9 = inlined_call_operand.hbm [shape: f32[128,128], index: 9, kind: input, shape index: {}]
  %s10 = inlined_call_operand.vmem [shape: f32[1,128], index: 10, kind: input, shape index: {}]
  %s11 = inlined_call_operand.hbm [shape: f32[128,128], index: 11, kind: input, shape index: {}]
  %s12 = inlined_call_operand.vmem [shape: f32[1,128], index: 12, kind: input, shape index: {}]
  %s13 = inlined_call_operand.hbm [shape: f32[128,128], index: 13, kind: input, shape index: {}]
  %s14 = inlined_call_operand.vmem [shape: f32[1,128], index: 14, kind: input, shape index: {}]
  %s15 = inlined_call_operand.hbm [shape: f32[128,128], index: 15, kind: input, shape index: {}]
  %s16 = inlined_call_operand.vmem [shape: f32[1,128], index: 16, kind: input, shape index: {}]
  %s17 = inlined_call_operand.hbm [shape: f32[128,128], index: 17, kind: input, shape index: {}]
  %s18 = inlined_call_operand.vmem [shape: f32[1,128], index: 18, kind: input, shape index: {}]
  %s19 = inlined_call_operand.hbm [shape: f32[256,128], index: 19, kind: output, shape index: {}]
  %s20 = sld [smem:[#allocation0]]
  $region133: #{tpu_custom_call.1} parent=0
    _
  %s22 = ssub.s32 1, %s20
  %s23 = scalar_select 0, %s22, %s20
  $region1: #{tpu_custom_call.1} parent=0
    #allocation2 [shape = 'u8[65536]{0}', space=vmem, size = 0x10000, scoped, tag = 'input window, operand 7, single buffered']
    #allocation3 [shape = 's32[2]{0}', space=sflag, size = 0x8, scoped, tag = 'scoped memory for tpu_custom_call.1']
    #allocation4 [shape = 's32[2]{0}', space=sflag, size = 0x8, scoped, tag = 'scoped memory for tpu_custom_call.1']
    #allocation5 [shape = 'u8[65536]{0}', space=vmem, size = 0x10000, scoped, tag = 'input window, operand 9, single buffered']
    #allocation6 [shape = 's32[1]{0}', space=sflag, size = 0x4, scoped, tag = 'scoped memory for tpu_custom_call.1']
    #allocation7 [shape = 'u8[65536]{0}', space=vmem, size = 0x10000, scoped, tag = 'input window, operand 11, single buffered']
    #allocation8 [shape = 'u8[65536]{0}', space=vmem, size = 0x10000, scoped, tag = 'input window, operand 13, single buffered']
    #allocation9 [shape = 's32[1]{0}', space=sflag, size = 0x4, scoped, tag = 'scoped memory for tpu_custom_call.1']
    #allocation10 [shape = 'u8[65536]{0}', space=vmem, size = 0x10000, scoped, tag = 'input window, operand 15, single buffered']
    #allocation11 [shape = 'u8[65536]{0}', space=vmem, size = 0x10000, scoped, tag = 'input window, operand 17, single buffered']
    #allocation12 [shape = 's32[1]{0}', space=sflag, size = 0x4, scoped, tag = 'scoped memory for tpu_custom_call.1']
    #allocation13 [shape = 'u8[131072]{0}', space=vmem, size = 0x20000, scoped, tag = 'output window, operand 0']
    %24 = vsyncpa [#allocation3], 0
    %25 = vsyncpa [#allocation6], 0
    %26 = vsyncpa [#allocation9], 0
    %27 = vsyncpa [#allocation12], 0
    %28 = vsyncpa [#allocation4], 0
    %s29 = scalar_lea.sflag [#allocation4], 1
    %30 = vsyncpa %s29, 0
    loop: start=0, step=1, limit=4
    $region2: #{tpu_custom_call.1} parent=1 // loop_pre_header
      _
    $region3: #{tpu_custom_call.1} parent=1 // loop_header
      %s32 = sphi 0, %s36
      %p33 = scmp.ge.s32.totalorder %s32, 4
      %s42 = sphi 0, %s44
      %s45 = sphi 0, %s42
      %s46 = sphi 0, %s45
      %s62 = sphi 0, %s46
      %s66 = sphi 0, %s66
      %s68 = sphi 0, %s66
      %s69 = sphi 0, %s68
      %s83 = sphi 0, %s69
      %s87 = sphi 0, %s87
      %s89 = sphi 0, %s87
      %s90 = sphi 0, %s89
      %s104 = sphi 0, %s90
      %s108 = sphi 0, %s108
      %s110 = sphi 0, %s108
      %s111 = sphi 0, %s110
      %s125 = sphi 0, %s111
      %s129 = sphi 0, %s129
      %s131 = sphi 0, %s129
      %s132 = sphi 0, %s131
      %s146 = sphi 0, %s132
      %s150 = sphi 0, %s150
      %s152 = sphi 0, %s150
      %s153 = sphi 0, %s152
      %s167 = sphi 0, %s153
      %s171 = sphi 0, %s171
      %s173 = sphi 0, %s171
      %s174 = sphi 0, %s173
      %s188 = sphi 0, %s174
      %s192 = sphi 0, %s192
      %s194 = sphi 0, %s192
      %s195 = sphi 0, %s194
      %s209 = sphi 0, %s195
      %s213 = sphi 0, %s213
      %s215 = sphi 0, %s213
      %s216 = sphi 0, %s215
      %s230 = sphi 0, %s216
      %s234 = sphi 0, %s234
      %s236 = sphi 0, %s234
      %s237 = sphi 0, %s236
      %s251 = sphi 0, %s237
      %s255 = sphi 0, %s255
      %s257 = sphi 0, %s255
      %s258 = sphi 0, %s257
      %s272 = sphi 0, %s258
      %s276 = sphi 0, %s276
      %s278 = sphi 0, %s276
      %s279 = sphi 0, %s278
      %s293 = sphi 0, %s279
      %s297 = sphi 0, %s297
      %s299 = sphi 0, %s297
      %s300 = sphi 0, %s299
      %s314 = sphi 0, %s300
      %s318 = sphi 0, %s318
      %s320 = sphi 0, %s318
      %s321 = sphi 0, %s320
      %s335 = sphi 0, %s321
      %s339 = sphi 0, %s339
      %s341 = sphi 0, %s339
      %s342 = sphi 0, %s341
      %s356 = sphi 0, %s342
      %s360 = sphi 0, %s360
      %s362 = sphi 0, %s360
      %s363 = sphi 0, %s362
      %s377 = sphi 0, %s363
      %s381 = sphi 0, %s381
      %s383 = sphi 0, %s381
      %s384 = sphi 0, %s383
      %s398 = sphi 0, %s384
      %s402 = sphi 0, %s402
      %s404 = sphi 0, %s402
      %s405 = sphi 0, %s404
      %s419 = sphi 0, %s405
      %s423 = sphi 0, %s423
      %s425 = sphi 0, %s423
      %s426 = sphi 0, %s425
      %s440 = sphi 0, %s426
      %s446 = sphi 0, %s448
      %s449 = sphi 0, %s446
      %s450 = sphi 0, %s449
      %s466 = sphi 0, %s450
    $region4: #{tpu_custom_call.1} parent=1 // loop_header_branch
      %35 = sbr.rel (%p33) target = $region8
    $region5: #{tpu_custom_call.1} parent=1 // loop_body
      %s37 = ssub.s32 %s32, 1
      %s38 = ssub.s32 %s32, 2
      %s39 = sadd.s32 %s32, 1
      %s40 = ssub.s32 %s32, %s39
      %p41 = scmp.eq.s32.totalorder %s40, 0
      %s43 = sadd.s32 %s42, 1
      %s44 = scalar_select %p41, %s42, %s43
      %p47 = pneg %p41
      %p48 = scmp.eq.s32.totalorder %s32, 1
      %p49 = por %p47, %p48
      %p50 = scmp.ne.s32.totalorder %s42, %s45
      %p51 = scmp.eq.s32.totalorder %s32, 0
      %p52 = por %p50, %p51
      %p53 = scmp.ne.s32.totalorder %s42, %s45
      %p54 = scmp.eq.s32.totalorder %s37, 1
      %p55 = por %p53, %p54
      %p56 = scmp.ne.s32.totalorder %s45, %s46
      %p57 = scmp.eq.s32.totalorder %s37, 0
      %p58 = por %p56, %p57
      %p59 = scmp.ne.s32.totalorder %s45, %s46
      %p60 = scmp.eq.s32.totalorder %s38, 1
      %p61 = por %p59, %p60
      %p63 = scmp.ne.s32.totalorder %s46, %s62
      %p64 = scmp.eq.s32.totalorder %s38, 0
      %p65 = por %p63, %p64
      %s67 = sadd.s32 %s66, 1
      %p70 = scmp.eq.s32.totalorder %s32, 1
      %p71 = scmp.ne.s32.totalorder %s66, %s68
      %p72 = scmp.eq.s32.totalorder %s32, 0
      %p73 = por %p71, %p72
      %p74 = scmp.ne.s32.totalorder %s66, %s68
      %p75 = scmp.eq.s32.totalorder %s37, 1
      %p76 = por %p74, %p75
      %p77 = scmp.ne.s32.totalorder %s68, %s69
      %p78 = scmp.eq.s32.totalorder %s37, 0
      %p79 = por %p77, %p78
      %p80 = scmp.ne.s32.totalorder %s68, %s69
      %p81 = scmp.eq.s32.totalorder %s38, 1
      %p82 = por %p80, %p81
      %p84 = scmp.ne.s32.totalorder %s69, %s83
      %p85 = scmp.eq.s32.totalorder %s38, 0
      %p86 = por %p84, %p85
      %s88 = sadd.s32 %s87, 1
      %p91 = scmp.eq.s32.totalorder %s32, 1
      %p92 = scmp.ne.s32.totalorder %s87, %s89
      %p93 = scmp.eq.s32.totalorder %s32, 0
      %p94 = por %p92, %p93
      %p95 = scmp.ne.s32.totalorder %s87, %s89
      %p96 = scmp.eq.s32.totalorder %s37, 1
      %p97 = por %p95, %p96
      %p98 = scmp.ne.s32.totalorder %s89, %s90
      %p99 = scmp.eq.s32.totalorder %s37, 0
      %p100 = por %p98, %p99
      %p101 = scmp.ne.s32.totalorder %s89, %s90
      %p102 = scmp.eq.s32.totalorder %s38, 1
      %p103 = por %p101, %p102
      %p105 = scmp.ne.s32.totalorder %s90, %s104
      %p106 = scmp.eq.s32.totalorder %s38, 0
      %p107 = por %p105, %p106
      %s109 = sadd.s32 %s108, 1
      %p112 = scmp.eq.s32.totalorder %s32, 1
      %p113 = scmp.ne.s32.totalorder %s108, %s110
      %p114 = scmp.eq.s32.totalorder %s32, 0
      %p115 = por %p113, %p114
      %p116 = scmp.ne.s32.totalorder %s108, %s110
      %p117 = scmp.eq.s32.totalorder %s37, 1
      %p118 = por %p116, %p117
      %p119 = scmp.ne.s32.totalorder %s110, %s111
      %p120 = scmp.eq.s32.totalorder %s37, 0
      %p121 = por %p119, %p120
      %p122 = scmp.ne.s32.totalorder %s110, %s111
      %p123 = scmp.eq.s32.totalorder %s38, 1
      %p124 = por %p122, %p123
      %p126 = scmp.ne.s32.totalorder %s111, %s125
      %p127 = scmp.eq.s32.totalorder %s38, 0
      %p128 = por %p126, %p127
      %s130 = sadd.s32 %s129, 1
      %p133 = scmp.eq.s32.totalorder %s32, 1
      %p134 = scmp.ne.s32.totalorder %s129, %s131
      %p135 = scmp.eq.s32.totalorder %s32, 0
      %p136 = por %p134, %p135
      %p137 = scmp.ne.s32.totalorder %s129, %s131
      %p138 = scmp.eq.s32.totalorder %s37, 1
      %p139 = por %p137, %p138
      %p140 = scmp.ne.s32.totalorder %s131, %s132
      %p141 = scmp.eq.s32.totalorder %s37, 0
      %p142 = por %p140, %p141
      %p143 = scmp.ne.s32.totalorder %s131, %s132
      %p144 = scmp.eq.s32.totalorder %s38, 1
      %p145 = por %p143, %p144
      %p147 = scmp.ne.s32.totalorder %s132, %s146
      %p148 = scmp.eq.s32.totalorder %s38, 0
      %p149 = por %p147, %p148
      %s151 = sadd.s32 %s150, 1
      %p154 = scmp.eq.s32.totalorder %s32, 1
      %p155 = scmp.ne.s32.totalorder %s150, %s152
      %p156 = scmp.eq.s32.totalorder %s32, 0
      %p157 = por %p155, %p156
      %p158 = scmp.ne.s32.totalorder %s150, %s152
      %p159 = scmp.eq.s32.totalorder %s37, 1
      %p160 = por %p158, %p159
      %p161 = scmp.ne.s32.totalorder %s152, %s153
      %p162 = scmp.eq.s32.totalorder %s37, 0
      %p163 = por %p161, %p162
      %p164 = scmp.ne.s32.totalorder %s152, %s153
      %p165 = scmp.eq.s32.totalorder %s38, 1
      %p166 = por %p164, %p165
      %p168 = scmp.ne.s32.totalorder %s153, %s167
      %p169 = scmp.eq.s32.totalorder %s38, 0
      %p170 = por %p168, %p169
      %s172 = sadd.s32 %s171, 1
      %p175 = scmp.eq.s32.totalorder %s32, 1
      %p176 = scmp.ne.s32.totalorder %s171, %s173
      %p177 = scmp.eq.s32.totalorder %s32, 0
      %p178 = por %p176, %p177
      %p179 = scmp.ne.s32.totalorder %s171, %s173
      %p180 = scmp.eq.s32.totalorder %s37, 1
      %p181 = por %p179, %p180
      %p182 = scmp.ne.s32.totalorder %s173, %s174
      %p183 = scmp.eq.s32.totalorder %s37, 0
      %p184 = por %p182, %p183
      %p185 = scmp.ne.s32.totalorder %s173, %s174
      %p186 = scmp.eq.s32.totalorder %s38, 1
      %p187 = por %p185, %p186
      %p189 = scmp.ne.s32.totalorder %s174, %s188
      %p190 = scmp.eq.s32.totalorder %s38, 0
      %p191 = por %p189, %p190
      %s193 = sadd.s32 %s192, 1
      %p196 = scmp.eq.s32.totalorder %s32, 1
      %p197 = scmp.ne.s32.totalorder %s192, %s194
      %p198 = scmp.eq.s32.totalorder %s32, 0
      %p199 = por %p197, %p198
      %p200 = scmp.ne.s32.totalorder %s192, %s194
      %p201 = scmp.eq.s32.totalorder %s37, 1
      %p202 = por %p200, %p201
      %p203 = scmp.ne.s32.totalorder %s194, %s195
      %p204 = scmp.eq.s32.totalorder %s37, 0
      %p205 = por %p203, %p204
      %p206 = scmp.ne.s32.totalorder %s194, %s195
      %p207 = scmp.eq.s32.totalorder %s38, 1
      %p208 = por %p206, %p207
      %p210 = scmp.ne.s32.totalorder %s195, %s209
      %p211 = scmp.eq.s32.totalorder %s38, 0
      %p212 = por %p210, %p211
      %s214 = sadd.s32 %s213, 1
      %p217 = scmp.eq.s32.totalorder %s32, 1
      %p218 = scmp.ne.s32.totalorder %s213, %s215
      %p219 = scmp.eq.s32.totalorder %s32, 0
      %p220 = por %p218, %p219
      %p221 = scmp.ne.s32.totalorder %s213, %s215
      %p222 = scmp.eq.s32.totalorder %s37, 1
      %p223 = por %p221, %p222
      %p224 = scmp.ne.s32.totalorder %s215, %s216
      %p225 = scmp.eq.s32.totalorder %s37, 0
      %p226 = por %p224, %p225
      %p227 = scmp.ne.s32.totalorder %s215, %s216
      %p228 = scmp.eq.s32.totalorder %s38, 1
      %p229 = por %p227, %p228
      %p231 = scmp.ne.s32.totalorder %s216, %s230
      %p232 = scmp.eq.s32.totalorder %s38, 0
      %p233 = por %p231, %p232
      %s235 = sadd.s32 %s234, 1
      %p238 = scmp.eq.s32.totalorder %s32, 1
      %p239 = scmp.ne.s32.totalorder %s234, %s236
      %p240 = scmp.eq.s32.totalorder %s32, 0
      %p241 = por %p239, %p240
      %p242 = scmp.ne.s32.totalorder %s234, %s236
      %p243 = scmp.eq.s32.totalorder %s37, 1
      %p244 = por %p242, %p243
      %p245 = scmp.ne.s32.totalorder %s236, %s237
      %p246 = scmp.eq.s32.totalorder %s37, 0
      %p247 = por %p245, %p246
      %p248 = scmp.ne.s32.totalorder %s236, %s237
      %p249 = scmp.eq.s32.totalorder %s38, 1
      %p250 = por %p248, %p249
      %p252 = scmp.ne.s32.totalorder %s237, %s251
      %p253 = scmp.eq.s32.totalorder %s38, 0
      %p254 = por %p252, %p253
      %s256 = sadd.s32 %s255, 1
      %p259 = scmp.eq.s32.totalorder %s32, 1
      %p260 = scmp.ne.s32.totalorder %s255, %s257
      %p261 = scmp.eq.s32.totalorder %s32, 0
      %p262 = por %p260, %p261
      %p263 = scmp.ne.s32.totalorder %s255, %s257
      %p264 = scmp.eq.s32.totalorder %s37, 1
      %p265 = por %p263, %p264
      %p266 = scmp.ne.s32.totalorder %s257, %s258
      %p267 = scmp.eq.s32.totalorder %s37, 0
      %p268 = por %p266, %p267
      %p269 = scmp.ne.s32.totalorder %s257, %s258
      %p270 = scmp.eq.s32.totalorder %s38, 1
      %p271 = por %p269, %p270
      %p273 = scmp.ne.s32.totalorder %s258, %s272
      %p274 = scmp.eq.s32.totalorder %s38, 0
      %p275 = por %p273, %p274
      %s277 = sadd.s32 %s276, 1
      %p280 = scmp.eq.s32.totalorder %s32, 1
      %p281 = scmp.ne.s32.totalorder %s276, %s278
      %p282 = scmp.eq.s32.totalorder %s32, 0
      %p283 = por %p281, %p282
      %p284 = scmp.ne.s32.totalorder %s276, %s278
      %p285 = scmp.eq.s32.totalorder %s37, 1
      %p286 = por %p284, %p285
      %p287 = scmp.ne.s32.totalorder %s278, %s279
      %p288 = scmp.eq.s32.totalorder %s37, 0
      %p289 = por %p287, %p288
      %p290 = scmp.ne.s32.totalorder %s278, %s279
      %p291 = scmp.eq.s32.totalorder %s38, 1
      %p292 = por %p290, %p291
      %p294 = scmp.ne.s32.totalorder %s279, %s293
      %p295 = scmp.eq.s32.totalorder %s38, 0
      %p296 = por %p294, %p295
      %s298 = sadd.s32 %s297, 1
      %p301 = scmp.eq.s32.totalorder %s32, 1
      %p302 = scmp.ne.s32.totalorder %s297, %s299
      %p303 = scmp.eq.s32.totalorder %s32, 0
      %p304 = por %p302, %p303
      %p305 = scmp.ne.s32.totalorder %s297, %s299
      %p306 = scmp.eq.s32.totalorder %s37, 1
      %p307 = por %p305, %p306
      %p308 = scmp.ne.s32.totalorder %s299, %s300
      %p309 = scmp.eq.s32.totalorder %s37, 0
      %p310 = por %p308, %p309
      %p311 = scmp.ne.s32.totalorder %s299, %s300
      %p312 = scmp.eq.s32.totalorder %s38, 1
      %p313 = por %p311, %p312
      %p315 = scmp.ne.s32.totalorder %s300, %s314
      %p316 = scmp.eq.s32.totalorder %s38, 0
      %p317 = por %p315, %p316
      %s319 = sadd.s32 %s318, 1
      %p322 = scmp.eq.s32.totalorder %s32, 1
      %p323 = scmp.ne.s32.totalorder %s318, %s320
      %p324 = scmp.eq.s32.totalorder %s32, 0
      %p325 = por %p323, %p324
      %p326 = scmp.ne.s32.totalorder %s318, %s320
      %p327 = scmp.eq.s32.totalorder %s37, 1
      %p328 = por %p326, %p327
      %p329 = scmp.ne.s32.totalorder %s320, %s321
      %p330 = scmp.eq.s32.totalorder %s37, 0
      %p331 = por %p329, %p330
      %p332 = scmp.ne.s32.totalorder %s320, %s321
      %p333 = scmp.eq.s32.totalorder %s38, 1
      %p334 = por %p332, %p333
      %p336 = scmp.ne.s32.totalorder %s321, %s335
      %p337 = scmp.eq.s32.totalorder %s38, 0
      %p338 = por %p336, %p337
      %s340 = sadd.s32 %s339, 1
      %p343 = scmp.eq.s32.totalorder %s32, 1
      %p344 = scmp.ne.s32.totalorder %s339, %s341
      %p345 = scmp.eq.s32.totalorder %s32, 0
      %p346 = por %p344, %p345
      %p347 = scmp.ne.s32.totalorder %s339, %s341
      %p348 = scmp.eq.s32.totalorder %s37, 1
      %p349 = por %p347, %p348
      %p350 = scmp.ne.s32.totalorder %s341, %s342
      %p351 = scmp.eq.s32.totalorder %s37, 0
      %p352 = por %p350, %p351
      %p353 = scmp.ne.s32.totalorder %s341, %s342
      %p354 = scmp.eq.s32.totalorder %s38, 1
      %p355 = por %p353, %p354
      %p357 = scmp.ne.s32.totalorder %s342, %s356
      %p358 = scmp.eq.s32.totalorder %s38, 0
      %p359 = por %p357, %p358
      %s361 = sadd.s32 %s360, 1
      %p364 = scmp.eq.s32.totalorder %s32, 1
      %p365 = scmp.ne.s32.totalorder %s360, %s362
      %p366 = scmp.eq.s32.totalorder %s32, 0
      %p367 = por %p365, %p366
      %p368 = scmp.ne.s32.totalorder %s360, %s362
      %p369 = scmp.eq.s32.totalorder %s37, 1
      %p370 = por %p368, %p369
      %p371 = scmp.ne.s32.totalorder %s362, %s363
      %p372 = scmp.eq.s32.totalorder %s37, 0
      %p373 = por %p371, %p372
      %p374 = scmp.ne.s32.totalorder %s362, %s363
      %p375 = scmp.eq.s32.totalorder %s38, 1
      %p376 = por %p374, %p375
      %p378 = scmp.ne.s32.totalorder %s363, %s377
      %p379 = scmp.eq.s32.totalorder %s38, 0
      %p380 = por %p378, %p379
      %s382 = sadd.s32 %s381, 1
      %p385 = scmp.eq.s32.totalorder %s32, 1
      %p386 = scmp.ne.s32.totalorder %s381, %s383
      %p387 = scmp.eq.s32.totalorder %s32, 0
      %p388 = por %p386, %p387
      %p389 = scmp.ne.s32.totalorder %s381, %s383
      %p390 = scmp.eq.s32.totalorder %s37, 1
      %p391 = por %p389, %p390
      %p392 = scmp.ne.s32.totalorder %s383, %s384
      %p393 = scmp.eq.s32.totalorder %s37, 0
      %p394 = por %p392, %p393
      %p395 = scmp.ne.s32.totalorder %s383, %s384
      %p396 = scmp.eq.s32.totalorder %s38, 1
      %p397 = por %p395, %p396
      %p399 = scmp.ne.s32.totalorder %s384, %s398
      %p400 = scmp.eq.s32.totalorder %s38, 0
      %p401 = por %p399, %p400
      %s403 = sadd.s32 %s402, 1
      %p406 = scmp.eq.s32.totalorder %s32, 1
      %p407 = scmp.ne.s32.totalorder %s402, %s404
      %p408 = scmp.eq.s32.totalorder %s32, 0
      %p409 = por %p407, %p408
      %p410 = scmp.ne.s32.totalorder %s402, %s404
      %p411 = scmp.eq.s32.totalorder %s37, 1
      %p412 = por %p410, %p411
      %p413 = scmp.ne.s32.totalorder %s404, %s405
      %p414 = scmp.eq.s32.totalorder %s37, 0
      %p415 = por %p413, %p414
      %p416 = scmp.ne.s32.totalorder %s404, %s405
      %p417 = scmp.eq.s32.totalorder %s38, 1
      %p418 = por %p416, %p417
      %p420 = scmp.ne.s32.totalorder %s405, %s419
      %p421 = scmp.eq.s32.totalorder %s38, 0
      %p422 = por %p420, %p421
      %s424 = sadd.s32 %s423, 1
      %p427 = scmp.eq.s32.totalorder %s32, 1
      %p428 = scmp.ne.s32.totalorder %s423, %s425
      %p429 = scmp.eq.s32.totalorder %s32, 0
      %p430 = por %p428, %p429
      %p431 = scmp.ne.s32.totalorder %s423, %s425
      %p432 = scmp.eq.s32.totalorder %s37, 1
      %p433 = por %p431, %p432
      %p434 = scmp.ne.s32.totalorder %s425, %s426
      %p435 = scmp.eq.s32.totalorder %s37, 0
      %p436 = por %p434, %p435
      %p437 = scmp.ne.s32.totalorder %s425, %s426
      %p438 = scmp.eq.s32.totalorder %s38, 1
      %p439 = por %p437, %p438
      %p441 = scmp.ne.s32.totalorder %s426, %s440
      %p442 = scmp.eq.s32.totalorder %s38, 0
      %p443 = por %p441, %p442
      %s444 = ssub.s32 %s32, %s39
      %p445 = scmp.eq.s32.totalorder %s444, 0
      %s447 = sadd.s32 %s446, 1
      %s448 = scalar_select %p445, %s446, %s447
      %p451 = pneg %p445
      %p452 = scmp.eq.s32.totalorder %s32, 1
      %p453 = por %p451, %p452
      %p454 = scmp.ne.s32.totalorder %s446, %s449
      %p455 = scmp.eq.s32.totalorder %s32, 0
      %p456 = por %p454, %p455
      %p457 = scmp.ne.s32.totalorder %s446, %s449
      %p458 = scmp.eq.s32.totalorder %s37, 1
      %p459 = por %p457, %p458
      %p460 = scmp.ne.s32.totalorder %s449, %s450
      %p461 = scmp.eq.s32.totalorder %s37, 0
      %p462 = por %p460, %p461
      %p463 = scmp.ne.s32.totalorder %s449, %s450
      %p464 = scmp.eq.s32.totalorder %s38, 1
      %p465 = por %p463, %p464
      %p467 = scmp.ne.s32.totalorder %s450, %s466
      %p468 = scmp.eq.s32.totalorder %s38, 0
      %p469 = por %p467, %p468
      %p470 = scmp.le.s32.totalorder 1, %s32
      %p471 = scmp.lt.s32.totalorder %s32, 3
      %p472 = pnand %p470, %p471
      %p473 = pneg %p472
      // Predicated region
      $region9: #{tpu_custom_call.1} parent=5 // pred_check
        _
      $region10: #{tpu_custom_call.1} parent=5 // pred_check_branch
        %475 = sbr.rel (%p472) target = $region12
      $region11: #{tpu_custom_call.1} parent=5 // pred_region
        %s476 = ssub.s32 %s32, 1
        // Predicated region
        $region13: #{tpu_custom_call.1} parent=11 // pred_check
          %p477 = pneg %p79
        $region14: #{tpu_custom_call.1} parent=11 // pred_check_branch
          %479 = sbr.rel (%p477) target = $region16
        $region15: #{tpu_custom_call.1} parent=11 // pred_region
          _
        $region16: #{tpu_custom_call.1} parent=11 // pred_fallthru
          _
        // Predicated region
        $region17: #{tpu_custom_call.1} parent=11 // pred_check
          %p480 = pneg %p100
        $region18: #{tpu_custom_call.1} parent=11 // pred_check_branch
          %482 = sbr.rel (%p480) target = $region20
        $region19: #{tpu_custom_call.1} parent=11 // pred_region
          _
        $region20: #{tpu_custom_call.1} parent=11 // pred_fallthru
          _
        // Predicated region
        $region21: #{tpu_custom_call.1} parent=11 // pred_check
          %p483 = pneg %p121
        $region22: #{tpu_custom_call.1} parent=11 // pred_check_branch
          %485 = sbr.rel (%p483) target = $region24
        $region23: #{tpu_custom_call.1} parent=11 // pred_region
          _
        $region24: #{tpu_custom_call.1} parent=11 // pred_fallthru
          _
        // Predicated region
        $region25: #{tpu_custom_call.1} parent=11 // pred_check
          %p486 = pneg %p142
        $region26: #{tpu_custom_call.1} parent=11 // pred_check_branch
          %488 = sbr.rel (%p486) target = $region28
        $region27: #{tpu_custom_call.1} parent=11 // pred_region
          _
        $region28: #{tpu_custom_call.1} parent=11 // pred_fallthru
          _
        // Predicated region
        $region29: #{tpu_custom_call.1} parent=11 // pred_check
          %p489 = pneg %p163
        $region30: #{tpu_custom_call.1} parent=11 // pred_check_branch
          %491 = sbr.rel (%p489) target = $region32
        $region31: #{tpu_custom_call.1} parent=11 // pred_region
          _
        $region32: #{tpu_custom_call.1} parent=11 // pred_fallthru
          _
        // Predicated region
        $region33: #{tpu_custom_call.1} parent=11 // pred_check
          %p492 = pneg %p184
        $region34: #{tpu_custom_call.1} parent=11 // pred_check_branch
          %494 = sbr.rel (%p492) target = $region36
        $region35: #{tpu_custom_call.1} parent=11 // pred_region
          _
        $region36: #{tpu_custom_call.1} parent=11 // pred_fallthru
          _
        // Predicated region
        $region37: #{tpu_custom_call.1} parent=11 // pred_check
          %p495 = pneg %p205
        $region38: #{tpu_custom_call.1} parent=11 // pred_check_branch
          %497 = sbr.rel (%p495) target = $region40
        $region39: #{tpu_custom_call.1} parent=11 // pred_region
          %s499 = ssub.s32 2048, 2048
          %500 = vsyncadd [#allocation3], %s499
          %s501 = sshll.u32 [#allocation2], 4
          %s502 = int_to_ptr.vmem [resolvable:$true] %s501
          %507 = dma.hbm_to_vmem [thread:$0]  %s7, 2048, %s502, [#allocation3], 128, 128, 8
        $region40: #{tpu_custom_call.1} parent=11 // pred_fallthru
          _
        // Predicated region
        $region41: #{tpu_custom_call.1} parent=11 // pred_check
          %p508 = pneg %p226
        $region42: #{tpu_custom_call.1} parent=11 // pred_check_branch
          %510 = sbr.rel (%p508) target = $region44
        $region43: #{tpu_custom_call.1} parent=11 // pred_region
          _
        $region44: #{tpu_custom_call.1} parent=11 // pred_fallthru
          _
        // Predicated region
        $region45: #{tpu_custom_call.1} parent=11 // pred_check
          %p511 = pneg %p247
        $region46: #{tpu_custom_call.1} parent=11 // pred_check_branch
          %513 = sbr.rel (%p511) target = $region48
        $region47: #{tpu_custom_call.1} parent=11 // pred_region
          %s515 = ssub.s32 2048, 2048
          %516 = vsyncadd [#allocation6], %s515
          %s517 = sshll.u32 [#allocation5], 4
          %s518 = int_to_ptr.vmem [resolvable:$true] %s517
          %523 = dma.hbm_to_vmem [thread:$0]  %s9, 2048, %s518, [#allocation6], 128, 128, 8
        $region48: #{tpu_custom_call.1} parent=11 // pred_fallthru
          _
        // Predicated region
        $region49: #{tpu_custom_call.1} parent=11 // pred_check
          %p524 = pneg %p268
        $region50: #{tpu_custom_call.1} parent=11 // pred_check_branch
          %526 = sbr.rel (%p524) target = $region52
        $region51: #{tpu_custom_call.1} parent=11 // pred_region
          _
        $region52: #{tpu_custom_call.1} parent=11 // pred_fallthru
          _
        // Predicated region
        $region53: #{tpu_custom_call.1} parent=11 // pred_check
          %p527 = pneg %p289
        $region54: #{tpu_custom_call.1} parent=11 // pred_check_branch
          %529 = sbr.rel (%p527) target = $region56
        $region55: #{tpu_custom_call.1} parent=11 // pred_region
          %s531 = ssub.s32 2048, 2048
          %532 = vsyncadd [#allocation6], %s531
          %s533 = sshll.u32 [#allocation7], 4
          %s534 = int_to_ptr.vmem [resolvable:$true] %s533
          %539 = dma.hbm_to_vmem [thread:$0]  %s11, 2048, %s534, [#allocation6], 128, 128, 8
        $region56: #{tpu_custom_call.1} parent=11 // pred_fallthru
          _
        // Predicated region
        $region57: #{tpu_custom_call.1} parent=11 // pred_check
          %p540 = pneg %p310
        $region58: #{tpu_custom_call.1} parent=11 // pred_check_branch
          %542 = sbr.rel (%p540) target = $region60
        $region59: #{tpu_custom_call.1} parent=11 // pred_region
          _
        $region60: #{tpu_custom_call.1} parent=11 // pred_fallthru
          _
        // Predicated region
        $region61: #{tpu_custom_call.1} parent=11 // pred_check
          %p543 = pneg %p331
        $region62: #{tpu_custom_call.1} parent=11 // pred_check_branch
          %545 = sbr.rel (%p543) target = $region64
        $region63: #{tpu_custom_call.1} parent=11 // pred_region
          %s547 = ssub.s32 2048, 2048
          %548 = vsyncadd [#allocation9], %s547
          %s549 = sshll.u32 [#allocation8], 4
          %s550 = int_to_ptr.vmem [resolvable:$true] %s549
          %555 = dma.hbm_to_vmem [thread:$0]  %s13, 2048, %s550, [#allocation9], 128, 128, 8
        $region64: #{tpu_custom_call.1} parent=11 // pred_fallthru
          _
        // Predicated region
        $region65: #{tpu_custom_call.1} parent=11 // pred_check
          %p556 = pneg %p352
        $region66: #{tpu_custom_call.1} parent=11 // pred_check_branch
          %558 = sbr.rel (%p556) target = $region68
        $region67: #{tpu_custom_call.1} parent=11 // pred_region
          _
        $region68: #{tpu_custom_call.1} parent=11 // pred_fallthru
          _
        // Predicated region
        $region69: #{tpu_custom_call.1} parent=11 // pred_check
          %p559 = pneg %p373
        $region70: #{tpu_custom_call.1} parent=11 // pred_check_branch
          %561 = sbr.rel (%p559) target = $region72
        $region71: #{tpu_custom_call.1} parent=11 // pred_region
          %s563 = ssub.s32 2048, 2048
          %564 = vsyncadd [#allocation9], %s563
          %s565 = sshll.u32 [#allocation10], 4
          %s566 = int_to_ptr.vmem [resolvable:$true] %s565
          %571 = dma.hbm_to_vmem [thread:$0]  %s15, 2048, %s566, [#allocation9], 128, 128, 8
        $region72: #{tpu_custom_call.1} parent=11 // pred_fallthru
          _
        // Predicated region
        $region73: #{tpu_custom_call.1} parent=11 // pred_check
          %p572 = pneg %p394
        $region74: #{tpu_custom_call.1} parent=11 // pred_check_branch
          %574 = sbr.rel (%p572) target = $region76
        $region75: #{tpu_custom_call.1} parent=11 // pred_region
          _
        $region76: #{tpu_custom_call.1} parent=11 // pred_fallthru
          _
        // Predicated region
        $region77: #{tpu_custom_call.1} parent=11 // pred_check
          %p575 = pneg %p415
        $region78: #{tpu_custom_call.1} parent=11 // pred_check_branch
          %577 = sbr.rel (%p575) target = $region80
        $region79: #{tpu_custom_call.1} parent=11 // pred_region
          %s579 = ssub.s32 2048, 2048
          %580 = vsyncadd [#allocation12], %s579
          %s581 = sshll.u32 [#allocation11], 4
          %s582 = int_to_ptr.vmem [resolvable:$true] %s581
          %587 = dma.hbm_to_vmem [thread:$0]  %s17, 2048, %s582, [#allocation12], 128, 128, 8
        $region80: #{tpu_custom_call.1} parent=11 // pred_fallthru
          _
        // Predicated region
        $region81: #{tpu_custom_call.1} parent=11 // pred_check
          %p588 = pneg %p436
        $region82: #{tpu_custom_call.1} parent=11 // pred_check_branch
          %590 = sbr.rel (%p588) target = $region84
        $region83: #{tpu_custom_call.1} parent=11 // pred_region
          _
        $region84: #{tpu_custom_call.1} parent=11 // pred_fallthru
          _
      $region12: #{tpu_custom_call.1} parent=5 // pred_fallthru
        _
      %p591 = scmp.lt.s32.totalorder %s32, 2
      // Predicated region
      $region85: #{tpu_custom_call.1} parent=5 // pred_check
        %p592 = pneg %p591
      $region86: #{tpu_custom_call.1} parent=5 // pred_check_branch
        %594 = sbr.rel (%p592) target = $region88
      $region87: #{tpu_custom_call.1} parent=5 // pred_region
        // Predicated region
        $region89: #{tpu_custom_call.1} parent=87 // pred_check
          %p595 = pneg %p52
        $region90: #{tpu_custom_call.1} parent=87 // pred_check_branch
          %597 = sbr.rel (%p595) target = $region92
        $region91: #{tpu_custom_call.1} parent=87 // pred_region
          %s598 = smul.u32 16, %s32
          %p599 = scmp.lt.s32.totalorder %s598, 31
          %s600 = scalar_select %p599, %s598, 31
          %s601 = smul.addr %s600, 8
          %s602 = scalar_lea.vmem %s0, %s601
          %s603 = smul.u32 16, %s32
        $region92: #{tpu_custom_call.1} parent=87 // pred_fallthru
          _
      $region88: #{tpu_custom_call.1} parent=5 // pred_fallthru
        _
      %p604 = scmp.le.s32.totalorder 1, %s32
      %p605 = scmp.lt.s32.totalorder %s32, 3
      %p606 = pnand %p604, %p605
      %p607 = pneg %p606
      // Predicated region
      $region93: #{tpu_custom_call.1} parent=5 // pred_check
        _
      $region94: #{tpu_custom_call.1} parent=5 // pred_check_branch
        %609 = sbr.rel (%p606) target = $region96
      $region95: #{tpu_custom_call.1} parent=5 // pred_region
        %s610 = ssub.s32 %s32, 1
        // Predicated region
        $region97: #{tpu_custom_call.1} parent=95 // pred_check
          %p611 = pneg %p205
        $region98: #{tpu_custom_call.1} parent=95 // pred_check_branch
          %613 = sbr.rel (%p611) target = $region100
        $region99: #{tpu_custom_call.1} parent=95 // pred_region
          %614 = dma.done [#allocation3], 2048
        $region100: #{tpu_custom_call.1} parent=95 // pred_fallthru
          _
        // Predicated region
        $region101: #{tpu_custom_call.1} parent=95 // pred_check
          %p615 = pneg %p247
        $region102: #{tpu_custom_call.1} parent=95 // pred_check_branch
          %617 = sbr.rel (%p615) target = $region104
        $region103: #{tpu_custom_call.1} parent=95 // pred_region
          %618 = dma.done [#allocation6], 2048
        $region104: #{tpu_custom_call.1} parent=95 // pred_fallthru
          _
        // Predicated region
        $region105: #{tpu_custom_call.1} parent=95 // pred_check
          %p619 = pneg %p289
        $region106: #{tpu_custom_call.1} parent=95 // pred_check_branch
          %621 = sbr.rel (%p619) target = $region108
        $region107: #{tpu_custom_call.1} parent=95 // pred_region
          %622 = dma.done [#allocation6], 2048
        $region108: #{tpu_custom_call.1} parent=95 // pred_fallthru
          _
        // Predicated region
        $region109: #{tpu_custom_call.1} parent=95 // pred_check
          %p623 = pneg %p331
        $region110: #{tpu_custom_call.1} parent=95 // pred_check_branch
          %625 = sbr.rel (%p623) target = $region112
        $region111: #{tpu_custom_call.1} parent=95 // pred_region
          %626 = dma.done [#allocation9], 2048
        $region112: #{tpu_custom_call.1} parent=95 // pred_fallthru
          _
        // Predicated region
        $region113: #{tpu_custom_call.1} parent=95 // pred_check
          %p627 = pneg %p373
        $region114: #{tpu_custom_call.1} parent=95 // pred_check_branch
          %629 = sbr.rel (%p627) target = $region116
        $region115: #{tpu_custom_call.1} parent=95 // pred_region
          %630 = dma.done [#allocation9], 2048
        $region116: #{tpu_custom_call.1} parent=95 // pred_fallthru
          _
        // Predicated region
        $region117: #{tpu_custom_call.1} parent=95 // pred_check
          %p631 = pneg %p415
        $region118: #{tpu_custom_call.1} parent=95 // pred_check_branch
          %633 = sbr.rel (%p631) target = $region120
        $region119: #{tpu_custom_call.1} parent=95 // pred_region
          %634 = dma.done [#allocation12], 2048
        $region120: #{tpu_custom_call.1} parent=95 // pred_fallthru
          _
        %s635 = smul.u32 16, %s37
        %p636 = scmp.lt.s32.totalorder %s635, 31
        %s637 = scalar_select %p636, %s635, 31
        %s638 = smul.addr %s637, 8
        %s639 = scalar_lea.vmem %s0, %s638
        %p640 = pneg %p58
        %p641 = pneg %p55
        %p642 = pneg %p79
        %p643 = pneg %p76
        %p644 = pneg %p100
        %p645 = pneg %p97
        %p646 = pneg %p121
        %p647 = pneg %p118
        %p648 = pneg %p142
        %p649 = pneg %p139
        %p650 = pneg %p163
        %p651 = pneg %p160
        %p652 = pneg %p184
        %p653 = pneg %p181
        %p654 = pneg %p205
        %p655 = pneg %p202
        %p656 = pneg %p226
        %p657 = pneg %p223
        %p658 = pneg %p247
        %p659 = pneg %p244
        %p660 = pneg %p268
        %p661 = pneg %p265
        %p662 = pneg %p289
        %p663 = pneg %p286
        %p664 = pneg %p310
        %p665 = pneg %p307
        %p666 = pneg %p331
        %p667 = pneg %p328
        %p668 = pneg %p352
        %p669 = pneg %p349
        %p670 = pneg %p373
        %p671 = pneg %p370
        %p672 = pneg %p394
        %p673 = pneg %p391
        %p674 = pneg %p415
        %p675 = pneg %p412
        %p676 = pneg %p436
        %p677 = pneg %p433
        %p678 = pneg %p462
        %p679 = pneg %p459
        %s680 = sand.u32 %s449, 1
        %s681 = scalar_lea.sflag [#allocation4], %s680
        %s682 = sand.u32 %s449, 1
        %s683 = smul.addr %s682, 128
        %s684 = scalar_lea.vmem [#allocation13], %s683
        %s685 = smul.u32 16, %s37
        %p686 = scmp.lt.s32.totalorder %s685, 31
        %s687 = scalar_select %p686, %s685, 31
        %s688 = smul.addr %s687, 8
        %s689 = scalar_lea.vmem %s0, %s688
        %s690 = smul.u32 16, %s37
        %s691 = smul.u32 16, %s37
        %v692 = vld [vmem:[%s689] sm:$0xff]
        %v693 = vld [vmem:[%s689 + $0x8] sm:$0xff]
        %v694 = vld [vmem:[%s689 + $0x10] sm:$0xff]
        %v695 = vld [vmem:[%s689 + $0x18] sm:$0xff]
        %v696 = vld [vmem:[%s689 + $0x20] sm:$0xff]
        %v697 = vld [vmem:[%s689 + $0x28] sm:$0xff]
        %v698 = vld [vmem:[%s689 + $0x30] sm:$0xff]
        %v699 = vld [vmem:[%s689 + $0x38] sm:$0xff]
        %v700 = vld [vmem:[%s689 + $0x40] sm:$0xff]
        %v701 = vld [vmem:[%s689 + $0x48] sm:$0xff]
        %v702 = vld [vmem:[%s689 + $0x50] sm:$0xff]
        %v703 = vld [vmem:[%s689 + $0x58] sm:$0xff]
        %v704 = vld [vmem:[%s689 + $0x60] sm:$0xff]
        %v705 = vld [vmem:[%s689 + $0x68] sm:$0xff]
        %v706 = vld [vmem:[%s689 + $0x70] sm:$0xff]
        %v707 = vld [vmem:[%s689 + $0x78] sm:$0xff]
        %v708 = vld [vmem:[%s1] sm:$0xff]
        %v709 = vld [vmem:[%s1 + $0x8] sm:$0xff]
        %v710 = vld [vmem:[%s1 + $0x10] sm:$0xff]
        %v711 = vld [vmem:[%s1 + $0x18] sm:$0xff]
        %v712 = vld [vmem:[%s2] sm:$0x1]
        %v714 = vlaneseq
        %v715 = vshrl.u32 %v714, 7
        %v716 = vsub.s32 0, %v715
        %v717 = vrot.slane %v712, %v716
        %vm719 = vcmask 261120
        %v721 = vsel %vm719, %v692, 0
        %v724 = vsel %vm719, %v693, 0
        %v727 = vsel %vm719, %v694, 0
        %v730 = vsel %vm719, %v695, 0
        %v733 = vsel %vm719, %v696, 0
        %v736 = vsel %vm719, %v697, 0
        %v739 = vsel %vm719, %v698, 0
        %v742 = vsel %vm719, %v699, 0
        %v745 = vsel %vm719, %v700, 0
        %v748 = vsel %vm719, %v701, 0
        %v751 = vsel %vm719, %v702, 0
        %v754 = vsel %vm719, %v703, 0
        %v757 = vsel %vm719, %v704, 0
        %v760 = vsel %vm719, %v705, 0
        %v763 = vsel %vm719, %v706, 0
        %v766 = vsel %vm719, %v707, 0
        %768 = vmatprep.subr.mxu0 0.0
        %769 = vmatpush1.msra.mxu0 %v708
        %770 = vmatprep.subr.mxu0 0.0
        %771 = vmatpush1.msra.mxu0 %v709
        %772 = vmatprep.subr.mxu0 0.0
        %773 = vmatpush1.msra.mxu0 %v710
        %774 = vmatprep.subr.mxu0 0.0
        %775 = vmatpush1.msra.mxu0 %v711
        %776 = vmatprep.subr.mxu0 0.0
        %777 = vmatpush1.msra.mxu0 0.0
        %778 = vmatprep.subr.mxu0 0.0
        %779 = vmatpush1.msra.mxu0 0.0
        %780 = vmatprep.subr.mxu0 0.0
        %781 = vmatpush1.msra.mxu0 0.0
        %782 = vmatprep.subr.mxu0 0.0
        %783 = vmatpush1.msra.mxu0 0.0
        %784 = vmatprep.subr.mxu0 0.0
        %785 = vmatpush1.msra.mxu0 0.0
        %786 = vmatprep.subr.mxu0 0.0
        %787 = vmatpush1.msra.mxu0 0.0
        %788 = vmatprep.subr.mxu0 0.0
        %789 = vmatpush1.msra.mxu0 0.0
        %790 = vmatprep.subr.mxu0 0.0
        %791 = vmatpush1.msra.mxu0 0.0
        %792 = vmatprep.subr.mxu0 0.0
        %793 = vmatpush1.msra.mxu0 0.0
        %794 = vmatprep.subr.mxu0 0.0
        %795 = vmatpush1.msra.mxu0 0.0
        %796 = vmatprep.subr.mxu0 0.0
        %797 = vmatpush1.msra.mxu0 0.0
        %798 = vmatprep.subr.mxu0 0.0
        %799 = vmatpush1.msra.mxu0 0.0
        %800 = vmatprep.subr.mxu0 0.0
        %801 = vmatpush1.msra.mxu0 0.0
        %802 = vmatprep.subr.mxu0 0.0
        %803 = vmatpush1.msra.mxu0 0.0
        %804 = vmatprep.subr.mxu0 0.0
        %805 = vmatpush1.msra.mxu0 0.0
        %806 = vmatprep.subr.mxu0 0.0
        %807 = vmatpush1.msra.mxu0 0.0
        %808 = vmatprep.subr.mxu0 0.0
        %809 = vmatpush1.msra.mxu0 0.0
        %810 = vmatprep.subr.mxu0 0.0
        %811 = vmatpush1.msra.mxu0 0.0
        %812 = vmatprep.subr.mxu0 0.0
        %813 = vmatpush1.msra.mxu0 0.0
        %814 = vmatprep.subr.mxu0 0.0
        %815 = vmatpush1.msra.mxu0 0.0
        %816 = vmatprep.subr.mxu0 0.0
        %817 = vmatpush1.msra.mxu0 0.0
        %818 = vmatprep.subr.mxu0 0.0
        %819 = vmatpush1.msra.mxu0 0.0
        %820 = vmatprep.subr.mxu0 0.0
        %821 = vmatpush1.msra.mxu0 0.0
        %822 = vmatprep.subr.mxu0 0.0
        %823 = vmatpush1.msra.mxu0 0.0
        %824 = vmatprep.subr.mxu0 0.0
        %825 = vmatpush1.msra.mxu0 0.0
        %826 = vmatprep.subr.mxu0 0.0
        %827 = vmatpush1.msra.mxu0 0.0
        %828 = vmatprep.subr.mxu0 0.0
        %829 = vmatpush1.msra.mxu0 0.0
        %830 = vmatprep.subr.mxu0 0.0
        %831 = vmatpush1.msra.mxu0 0.0
        %832 = vmatprep.mubr.f32.mxu0 0.0
        %833 = vmatmul.mubr.f32.gmra.mrb[0].mxu0 %v721
        %v834 = vpop.f32.mrb[0].mxu0
        %v835 = vadd.f32 %v717, %v834
        %v836 = vpop.f32.mrb[0].mxu0
        %837 = vmatprep.mubr.f32.mxu0 0.0
        %838 = vmatmul.mubr.f32.gmra.mrb[0].mxu0 %v724
        %v839 = vpop.f32.mrb[0].mxu0
        %v840 = vadd.f32 %v717, %v839
        %v841 = vpop.f32.mrb[0].mxu0
        %842 = vmatprep.mubr.f32.mxu0 0.0
        %843 = vmatmul.mubr.f32.gmra.mrb[0].mxu0 %v727
        %v844 = vpop.f32.mrb[0].mxu0
        %v845 = vadd.f32 %v717, %v844
        %v846 = vpop.f32.mrb[0].mxu0
        %847 = vmatprep.mubr.f32.mxu0 0.0
        %848 = vmatmul.mubr.f32.gmra.mrb[0].mxu0 %v730
        %v849 = vpop.f32.mrb[0].mxu0
        %v850 = vadd.f32 %v717, %v849
        %v851 = vpop.f32.mrb[0].mxu0
        %852 = vmatprep.mubr.f32.mxu0 0.0
        %853 = vmatmul.mubr.f32.gmra.mrb[0].mxu0 %v733
        %v854 = vpop.f32.mrb[0].mxu0
        %v855 = vadd.f32 %v717, %v854
        %v856 = vpop.f32.mrb[0].mxu0
        %857 = vmatprep.mubr.f32.mxu0 0.0
        %858 = vmatmul.mubr.f32.gmra.mrb[0].mxu0 %v736
        %v859 = vpop.f32.mrb[0].mxu0
        %v860 = vadd.f32 %v717, %v859
        %v861 = vpop.f32.mrb[0].mxu0
        %862 = vmatprep.mubr.f32.mxu0 0.0
        %863 = vmatmul.mubr.f32.gmra.mrb[0].mxu0 %v739
        %v864 = vpop.f32.mrb[0].mxu0
        %v865 = vadd.f32 %v717, %v864
        %v866 = vpop.f32.mrb[0].mxu0
        %867 = vmatprep.mubr.f32.mxu0 0.0
        %868 = vmatmul.mubr.f32.gmra.mrb[0].mxu0 %v742
        %v869 = vpop.f32.mrb[0].mxu0
        %v870 = vadd.f32 %v717, %v869
        %v871 = vpop.f32.mrb[0].mxu0
        %872 = vmatprep.mubr.f32.mxu0 0.0
        %873 = vmatmul.mubr.f32.gmra.mrb[0].mxu0 %v745
        %v874 = vpop.f32.mrb[0].mxu0
        %v875 = vadd.f32 %v717, %v874
        %v876 = vpop.f32.mrb[0].mxu0
        %877 = vmatprep.mubr.f32.mxu0 0.0
        %878 = vmatmul.mubr.f32.gmra.mrb[0].mxu0 %v748
        %v879 = vpop.f32.mrb[0].mxu0
        %v880 = vadd.f32 %v717, %v879
        %v881 = vpop.f32.mrb[0].mxu0
        %882 = vmatprep.mubr.f32.mxu0 0.0
        %883 = vmatmul.mubr.f32.gmra.mrb[0].mxu0 %v751
        %v884 = vpop.f32.mrb[0].mxu0
        %v885 = vadd.f32 %v717, %v884
        %v886 = vpop.f32.mrb[0].mxu0
        %887 = vmatprep.mubr.f32.mxu0 0.0
        %888 = vmatmul.mubr.f32.gmra.mrb[0].mxu0 %v754
        %v889 = vpop.f32.mrb[0].mxu0
        %v890 = vadd.f32 %v717, %v889
        %v891 = vpop.f32.mrb[0].mxu0
        %892 = vmatprep.mubr.f32.mxu0 0.0
        %893 = vmatmul.mubr.f32.gmra.mrb[0].mxu0 %v757
        %v894 = vpop.f32.mrb[0].mxu0
        %v895 = vadd.f32 %v717, %v894
        %v896 = vpop.f32.mrb[0].mxu0
        %897 = vmatprep.mubr.f32.mxu0 0.0
        %898 = vmatmul.mubr.f32.gmra.mrb[0].mxu0 %v760
        %v899 = vpop.f32.mrb[0].mxu0
        %v900 = vadd.f32 %v717, %v899
        %v901 = vpop.f32.mrb[0].mxu0
        %902 = vmatprep.mubr.f32.mxu0 0.0
        %903 = vmatmul.mubr.f32.gmra.mrb[0].mxu0 %v763
        %v904 = vpop.f32.mrb[0].mxu0
        %v905 = vadd.f32 %v717, %v904
        %v906 = vpop.f32.mrb[0].mxu0
        %907 = vmatprep.mubr.f32.mxu0 0.0
        %908 = vmatmul.mubr.f32.gmra.mrb[0].mxu0 %v766
        %v909 = vpop.f32.mrb[0].mxu0
        %v910 = vadd.f32 %v717, %v909
        %v911 = vpop.f32.mrb[0].mxu0
        %912 = vdwg.mxu0
        %vm913 = vcmp.gt.f32.partialorder %v835, 0.0
        %vm914 = vcmp.gt.f32.partialorder %v840, 0.0
        %vm915 = vcmp.gt.f32.partialorder %v845, 0.0
        %vm916 = vcmp.gt.f32.partialorder %v850, 0.0
        %vm917 = vcmp.gt.f32.partialorder %v855, 0.0
        %vm918 = vcmp.gt.f32.partialorder %v860, 0.0
        %vm919 = vcmp.gt.f32.partialorder %v865, 0.0
        %vm920 = vcmp.gt.f32.partialorder %v870, 0.0
        %vm921 = vcmp.gt.f32.partialorder %v875, 0.0
        %vm922 = vcmp.gt.f32.partialorder %v880, 0.0
        %vm923 = vcmp.gt.f32.partialorder %v885, 0.0
        %vm924 = vcmp.gt.f32.partialorder %v890, 0.0
        %vm925 = vcmp.gt.f32.partialorder %v895, 0.0
        %vm926 = vcmp.gt.f32.partialorder %v900, 0.0
        %vm927 = vcmp.gt.f32.partialorder %v905, 0.0
        %vm928 = vcmp.gt.f32.partialorder %v910, 0.0
        %v929 = vmul.f32 %v835, 0.01
        %v930 = vmul.f32 %v840, 0.01
        %v931 = vmul.f32 %v845, 0.01
        %v932 = vmul.f32 %v850, 0.01
        %v933 = vmul.f32 %v855, 0.01
        %v934 = vmul.f32 %v860, 0.01
        %v935 = vmul.f32 %v865, 0.01
        %v936 = vmul.f32 %v870, 0.01
        %v937 = vmul.f32 %v875, 0.01
        %v938 = vmul.f32 %v880, 0.01
        %v939 = vmul.f32 %v885, 0.01
        %v940 = vmul.f32 %v890, 0.01
        %v941 = vmul.f32 %v895, 0.01
        %v942 = vmul.f32 %v900, 0.01
        %v943 = vmul.f32 %v905, 0.01
        %v944 = vmul.f32 %v910, 0.01
        %v945 = vsel %vm913, %v835, %v929
        %v946 = vsel %vm914, %v840, %v930
        %v947 = vsel %vm915, %v845, %v931
        %v948 = vsel %vm916, %v850, %v932
        %v949 = vsel %vm917, %v855, %v933
        %v950 = vsel %vm918, %v860, %v934
        %v951 = vsel %vm919, %v865, %v935
        %v952 = vsel %vm920, %v870, %v936
        %v953 = vsel %vm921, %v875, %v937
        %v954 = vsel %vm922, %v880, %v938
        %v955 = vsel %vm923, %v885, %v939
        %v956 = vsel %vm924, %v890, %v940
        %v957 = vsel %vm925, %v895, %v941
        %v958 = vsel %vm926, %v900, %v942
        %v959 = vsel %vm927, %v905, %v943
        %v960 = vsel %vm928, %v910, %v944
        %v961 = vld [vmem:[%s3] sm:$0xff]
        %v962 = vld [vmem:[%s3 + $0x8] sm:$0xff]
        %v963 = vld [vmem:[%s3 + $0x10] sm:$0xff]
        %v964 = vld [vmem:[%s3 + $0x18] sm:$0xff]
        %v965 = vld [vmem:[%s3 + $0x20] sm:$0xff]
        %v966 = vld [vmem:[%s3 + $0x28] sm:$0xff]
        %v967 = vld [vmem:[%s3 + $0x30] sm:$0xff]
        %v968 = vld [vmem:[%s3 + $0x38] sm:$0xff]
        %v969 = vld [vmem:[%s3 + $0x40] sm:$0xff]
        %v970 = vld [vmem:[%s3 + $0x48] sm:$0xff]
        %v971 = vld [vmem:[%s3 + $0x50] sm:$0xff]
        %v972 = vld [vmem:[%s3 + $0x58] sm:$0xff]
        %v973 = vld [vmem:[%s3 + $0x60] sm:$0xff]
        %v974 = vld [vmem:[%s3 + $0x68] sm:$0xff]
        %v975 = vld [vmem:[%s3 + $0x70] sm:$0xff]
        %v976 = vld [vmem:[%s3 + $0x78] sm:$0xff]
        %v977 = vld [vmem:[%s4] sm:$0x1]
        %v979 = vlaneseq
        %v980 = vshrl.u32 %v979, 7
        %v981 = vsub.s32 0, %v980
        %v982 = vrot.slane %v977, %v981
        %984 = vmatprep.subr.mxu0 0.0
        %985 = vmatpush1.msra.mxu0 %v961
        %986 = vmatprep.subr.mxu0 0.0
        %987 = vmatpush1.msra.mxu0 %v962
        %988 = vmatprep.subr.mxu0 0.0
        %989 = vmatpush1.msra.mxu0 %v963
        %990 = vmatprep.subr.mxu0 0.0
        %991 = vmatpush1.msra.mxu0 %v964
        %992 = vmatprep.subr.mxu0 0.0
        %993 = vmatpush1.msra.mxu0 %v965
        %994 = vmatprep.subr.mxu0 0.0
        %995 = vmatpush1.msra.mxu0 %v966
        %996 = vmatprep.subr.mxu0 0.0
        %997 = vmatpush1.msra.mxu0 %v967
        %998 = vmatprep.subr.mxu0 0.0
        %999 = vmatpush1.msra.mxu0 %v968
        %1000 = vmatprep.subr.mxu0 0.0
        %1001 = vmatpush1.msra.mxu0 %v969
        %1002 = vmatprep.subr.mxu0 0.0
        %1003 = vmatpush1.msra.mxu0 %v970
        %1004 = vmatprep.subr.mxu0 0.0
        %1005 = vmatpush1.msra.mxu0 %v971
        %1006 = vmatprep.subr.mxu0 0.0
        %1007 = vmatpush1.msra.mxu0 %v972
        %1008 = vmatprep.subr.mxu0 0.0
        %1009 = vmatpush1.msra.mxu0 %v973
        %1010 = vmatprep.subr.mxu0 0.0
        %1011 = vmatpush1.msra.mxu0 %v974
        %1012 = vmatprep.subr.mxu0 0.0
        %1013 = vmatpush1.msra.mxu0 %v975
        %1014 = vmatprep.subr.mxu0 0.0
        %1015 = vmatpush1.msra.mxu0 %v976
        %1016 = vmatprep.subr.mxu0 0.0
        %1017 = vmatpush1.msra.mxu0 0.0
        %1018 = vmatprep.subr.mxu0 0.0
        %1019 = vmatpush1.msra.mxu0 0.0
        %1020 = vmatprep.subr.mxu0 0.0
        %1021 = vmatpush1.msra.mxu0 0.0
        %1022 = vmatprep.subr.mxu0 0.0
        %1023 = vmatpush1.msra.mxu0 0.0
        %1024 = vmatprep.subr.mxu0 0.0
        %1025 = vmatpush1.msra.mxu0 0.0
        %1026 = vmatprep.subr.mxu0 0.0
        %1027 = vmatpush1.msra.mxu0 0.0
        %1028 = vmatprep.subr.mxu0 0.0
        %1029 = vmatpush1.msra.mxu0 0.0
        %1030 = vmatprep.subr.mxu0 0.0
        %1031 = vmatpush1.msra.mxu0 0.0
        %1032 = vmatprep.subr.mxu0 0.0
        %1033 = vmatpush1.msra.mxu0 0.0
        %1034 = vmatprep.subr.mxu0 0.0
        %1035 = vmatpush1.msra.mxu0 0.0
        %1036 = vmatprep.subr.mxu0 0.0
        %1037 = vmatpush1.msra.mxu0 0.0
        %1038 = vmatprep.subr.mxu0 0.0
        %1039 = vmatpush1.msra.mxu0 0.0
        %1040 = vmatprep.subr.mxu0 0.0
        %1041 = vmatpush1.msra.mxu0 0.0
        %1042 = vmatprep.subr.mxu0 0.0
        %1043 = vmatpush1.msra.mxu0 0.0
        %1044 = vmatprep.subr.mxu0 0.0
        %1045 = vmatpush1.msra.mxu0 0.0
        %1046 = vmatprep.subr.mxu0 0.0
        %1047 = vmatpush1.msra.mxu0 0.0
        %1048 = vmatprep.mubr.f32.mxu0 0.0
        %1049 = vmatmul.mubr.f32.gmra.mrb[0].mxu0 %v945
        %v1050 = vpop.f32.mrb[0].mxu0
        %v1051 = vadd.f32 %v982, %v1050
        %v1052 = vpop.f32.mrb[0].mxu0
        %1053 = vmatprep.mubr.f32.mxu0 0.0
        %1054 = vmatmul.mubr.f32.gmra.mrb[0].mxu0 %v946
        %v1055 = vpop.f32.mrb[0].mxu0
        %v1056 = vadd.f32 %v982, %v1055
        %v1057 = vpop.f32.mrb[0].mxu0
        %1058 = vmatprep.mubr.f32.mxu0 0.0
        %1059 = vmatmul.mubr.f32.gmra.mrb[0].mxu0 %v947
        %v1060 = vpop.f32.mrb[0].mxu0
        %v1061 = vadd.f32 %v982, %v1060
        %v1062 = vpop.f32.mrb[0].mxu0
        %1063 = vmatprep.mubr.f32.mxu0 0.0
        %1064 = vmatmul.mubr.f32.gmra.mrb[0].mxu0 %v948
        %v1065 = vpop.f32.mrb[0].mxu0
        %v1066 = vadd.f32 %v982, %v1065
        %v1067 = vpop.f32.mrb[0].mxu0
        %1068 = vmatprep.mubr.f32.mxu0 0.0
        %1069 = vmatmul.mubr.f32.gmra.mrb[0].mxu0 %v949
        %v1070 = vpop.f32.mrb[0].mxu0
        %v1071 = vadd.f32 %v982, %v1070
        %v1072 = vpop.f32.mrb[0].mxu0
        %1073 = vmatprep.mubr.f32.mxu0 0.0
        %1074 = vmatmul.mubr.f32.gmra.mrb[0].mxu0 %v950
        %v1075 = vpop.f32.mrb[0].mxu0
        %v1076 = vadd.f32 %v982, %v1075
        %v1077 = vpop.f32.mrb[0].mxu0
        %1078 = vmatprep.mubr.f32.mxu0 0.0
        %1079 = vmatmul.mubr.f32.gmra.mrb[0].mxu0 %v951
        %v1080 = vpop.f32.mrb[0].mxu0
        %v1081 = vadd.f32 %v982, %v1080
        %v1082 = vpop.f32.mrb[0].mxu0
        %1083 = vmatprep.mubr.f32.mxu0 0.0
        %1084 = vmatmul.mubr.f32.gmra.mrb[0].mxu0 %v952
        %v1085 = vpop.f32.mrb[0].mxu0
        %v1086 = vadd.f32 %v982, %v1085
        %v1087 = vpop.f32.mrb[0].mxu0
        %1088 = vmatprep.mubr.f32.mxu0 0.0
        %1089 = vmatmul.mubr.f32.gmra.mrb[0].mxu0 %v953
        %v1090 = vpop.f32.mrb[0].mxu0
        %v1091 = vadd.f32 %v982, %v1090
        %v1092 = vpop.f32.mrb[0].mxu0
        %1093 = vmatprep.mubr.f32.mxu0 0.0
        %1094 = vmatmul.mubr.f32.gmra.mrb[0].mxu0 %v954
        %v1095 = vpop.f32.mrb[0].mxu0
        %v1096 = vadd.f32 %v982, %v1095
        %v1097 = vpop.f32.mrb[0].mxu0
        %1098 = vmatprep.mubr.f32.mxu0 0.0
        %1099 = vmatmul.mubr.f32.gmra.mrb[0].mxu0 %v955
        %v1100 = vpop.f32.mrb[0].mxu0
        %v1101 = vadd.f32 %v982, %v1100
        %v1102 = vpop.f32.mrb[0].mxu0
        %1103 = vmatprep.mubr.f32.mxu0 0.0
        %1104 = vmatmul.mubr.f32.gmra.mrb[0].mxu0 %v956
        %v1105 = vpop.f32.mrb[0].mxu0
        %v1106 = vadd.f32 %v982, %v1105
        %v1107 = vpop.f32.mrb[0].mxu0
        %1108 = vmatprep.mubr.f32.mxu0 0.0
        %1109 = vmatmul.mubr.f32.gmra.mrb[0].mxu0 %v957
        %v1110 = vpop.f32.mrb[0].mxu0
        %v1111 = vadd.f32 %v982, %v1110
        %v1112 = vpop.f32.mrb[0].mxu0
        %1113 = vmatprep.mubr.f32.mxu0 0.0
        %1114 = vmatmul.mubr.f32.gmra.mrb[0].mxu0 %v958
        %v1115 = vpop.f32.mrb[0].mxu0
        %v1116 = vadd.f32 %v982, %v1115
        %v1117 = vpop.f32.mrb[0].mxu0
        %1118 = vmatprep.mubr.f32.mxu0 0.0
        %1119 = vmatmul.mubr.f32.gmra.mrb[0].mxu0 %v959
        %v1120 = vpop.f32.mrb[0].mxu0
        %v1121 = vadd.f32 %v982, %v1120
        %v1122 = vpop.f32.mrb[0].mxu0
        %1123 = vmatprep.mubr.f32.mxu0 0.0
        %1124 = vmatmul.mubr.f32.gmra.mrb[0].mxu0 %v960
        %v1125 = vpop.f32.mrb[0].mxu0
        %v1126 = vadd.f32 %v982, %v1125
        %v1127 = vpop.f32.mrb[0].mxu0
        %1128 = vdwg.mxu0
        %v1129 = vmax.f32 %v1051, 0.0
        %v1130 = vmax.f32 %v1056, 0.0
        %v1131 = vmax.f32 %v1061, 0.0
        %v1132 = vmax.f32 %v1066, 0.0
        %v1133 = vmax.f32 %v1071, 0.0
        %v1134 = vmax.f32 %v1076, 0.0
        %v1135 = vmax.f32 %v1081, 0.0
        %v1136 = vmax.f32 %v1086, 0.0
        %v1137 = vmax.f32 %v1091, 0.0
        %v1138 = vmax.f32 %v1096, 0.0
        %v1139 = vmax.f32 %v1101, 0.0
        %v1140 = vmax.f32 %v1106, 0.0
        %v1141 = vmax.f32 %v1111, 0.0
        %v1142 = vmax.f32 %v1116, 0.0
        %v1143 = vmax.f32 %v1121, 0.0
        %v1144 = vmax.f32 %v1126, 0.0
        %v1145 = vld [vmem:[%s5] sm:$0xff]
        %v1146 = vld [vmem:[%s5 + $0x8] sm:$0xff]
        %v1147 = vld [vmem:[%s5 + $0x10] sm:$0xff]
        %v1148 = vld [vmem:[%s5 + $0x18] sm:$0xff]
        %v1149 = vld [vmem:[%s5 + $0x20] sm:$0xff]
        %v1150 = vld [vmem:[%s5 + $0x28] sm:$0xff]
        %v1151 = vld [vmem:[%s5 + $0x30] sm:$0xff]
        %v1152 = vld [vmem:[%s5 + $0x38] sm:$0xff]
        %v1153 = vld [vmem:[%s5 + $0x40] sm:$0xff]
        %v1154 = vld [vmem:[%s5 + $0x48] sm:$0xff]
        %v1155 = vld [vmem:[%s5 + $0x50] sm:$0xff]
        %v1156 = vld [vmem:[%s5 + $0x58] sm:$0xff]
        %v1157 = vld [vmem:[%s5 + $0x60] sm:$0xff]
        %v1158 = vld [vmem:[%s5 + $0x68] sm:$0xff]
        %v1159 = vld [vmem:[%s5 + $0x70] sm:$0xff]
        %v1160 = vld [vmem:[%s5 + $0x78] sm:$0xff]
        %v1161 = vld [vmem:[%s6] sm:$0x1]
        %v1163 = vlaneseq
        %v1164 = vshrl.u32 %v1163, 7
        %v1165 = vsub.s32 0, %v1164
        %v1166 = vrot.slane %v1161, %v1165
        %1168 = vmatprep.subr.mxu0 0.0
        %1169 = vmatpush1.msra.mxu0 %v1145
        %1170 = vmatprep.subr.mxu0 0.0
        %1171 = vmatpush1.msra.mxu0 %v1146
        %1172 = vmatprep.subr.mxu0 0.0
        %1173 = vmatpush1.msra.mxu0 %v1147
        %1174 = vmatprep.subr.mxu0 0.0
        %1175 = vmatpush1.msra.mxu0 %v1148
        %1176 = vmatprep.subr.mxu0 0.0
        %1177 = vmatpush1.msra.mxu0 %v1149
        %1178 = vmatprep.subr.mxu0 0.0
        %1179 = vmatpush1.msra.mxu0 %v1150
        %1180 = vmatprep.subr.mxu0 0.0
        %1181 = vmatpush1.msra.mxu0 %v1151
        %1182 = vmatprep.subr.mxu0 0.0
        %1183 = vmatpush1.msra.mxu0 %v1152
        %1184 = vmatprep.subr.mxu0 0.0
        %1185 = vmatpush1.msra.mxu0 %v1153
        %1186 = vmatprep.subr.mxu0 0.0
        %1187 = vmatpush1.msra.mxu0 %v1154
        %1188 = vmatprep.subr.mxu0 0.0
        %1189 = vmatpush1.msra.mxu0 %v1155
        %1190 = vmatprep.subr.mxu0 0.0
        %1191 = vmatpush1.msra.mxu0 %v1156
        %1192 = vmatprep.subr.mxu0 0.0
        %1193 = vmatpush1.msra.mxu0 %v1157
        %1194 = vmatprep.subr.mxu0 0.0
        %1195 = vmatpush1.msra.mxu0 %v1158
        %1196 = vmatprep.subr.mxu0 0.0
        %1197 = vmatpush1.msra.mxu0 %v1159
        %1198 = vmatprep.subr.mxu0 0.0
        %1199 = vmatpush1.msra.mxu0 %v1160
        %1200 = vmatprep.subr.mxu0 0.0
        %1201 = vmatpush1.msra.mxu0 0.0
        %1202 = vmatprep.subr.mxu0 0.0
        %1203 = vmatpush1.msra.mxu0 0.0
        %1204 = vmatprep.subr.mxu0 0.0
        %1205 = vmatpush1.msra.mxu0 0.0
        %1206 = vmatprep.subr.mxu0 0.0
        %1207 = vmatpush1.msra.mxu0 0.0
        %1208 = vmatprep.subr.mxu0 0.0
        %1209 = vmatpush1.msra.mxu0 0.0
        %1210 = vmatprep.subr.mxu0 0.0
        %1211 = vmatpush1.msra.mxu0 0.0
        %1212 = vmatprep.subr.mxu0 0.0
        %1213 = vmatpush1.msra.mxu0 0.0
        %1214 = vmatprep.subr.mxu0 0.0
        %1215 = vmatpush1.msra.mxu0 0.0
        %1216 = vmatprep.subr.mxu0 0.0
        %1217 = vmatpush1.msra.mxu0 0.0
        %1218 = vmatprep.subr.mxu0 0.0
        %1219 = vmatpush1.msra.mxu0 0.0
        %1220 = vmatprep.subr.mxu0 0.0
        %1221 = vmatpush1.msra.mxu0 0.0
        %1222 = vmatprep.subr.mxu0 0.0
        %1223 = vmatpush1.msra.mxu0 0.0
        %1224 = vmatprep.subr.mxu0 0.0
        %1225 = vmatpush1.msra.mxu0 0.0
        %1226 = vmatprep.subr.mxu0 0.0
        %1227 = vmatpush1.msra.mxu0 0.0
        %1228 = vmatprep.subr.mxu0 0.0
        %1229 = vmatpush1.msra.mxu0 0.0
        %1230 = vmatprep.subr.mxu0 0.0
        %1231 = vmatpush1.msra.mxu0 0.0
        %1232 = vmatprep.mubr.f32.mxu0 0.0
        %1233 = vmatmul.mubr.f32.gmra.mrb[0].mxu0 %v1129
        %v1234 = vpop.f32.mrb[0].mxu0
        %v1235 = vadd.f32 %v1166, %v1234
        %v1236 = vpop.f32.mrb[0].mxu0
        %1237 = vmatprep.mubr.f32.mxu0 0.0
        %1238 = vmatmul.mubr.f32.gmra.mrb[0].mxu0 %v1130
        %v1239 = vpop.f32.mrb[0].mxu0
        %v1240 = vadd.f32 %v1166, %v1239
        %v1241 = vpop.f32.mrb[0].mxu0
        %1242 = vmatprep.mubr.f32.mxu0 0.0
        %1243 = vmatmul.mubr.f32.gmra.mrb[0].mxu0 %v1131
        %v1244 = vpop.f32.mrb[0].mxu0
        %v1245 = vadd.f32 %v1166, %v1244
        %v1246 = vpop.f32.mrb[0].mxu0
        %1247 = vmatprep.mubr.f32.mxu0 0.0
        %1248 = vmatmul.mubr.f32.gmra.mrb[0].mxu0 %v1132
        %v1249 = vpop.f32.mrb[0].mxu0
        %v1250 = vadd.f32 %v1166, %v1249
        %v1251 = vpop.f32.mrb[0].mxu0
        %1252 = vmatprep.mubr.f32.mxu0 0.0
        %1253 = vmatmul.mubr.f32.gmra.mrb[0].mxu0 %v1133
        %v1254 = vpop.f32.mrb[0].mxu0
        %v1255 = vadd.f32 %v1166, %v1254
        %v1256 = vpop.f32.mrb[0].mxu0
        %1257 = vmatprep.mubr.f32.mxu0 0.0
        %1258 = vmatmul.mubr.f32.gmra.mrb[0].mxu0 %v1134
        %v1259 = vpop.f32.mrb[0].mxu0
        %v1260 = vadd.f32 %v1166, %v1259
        %v1261 = vpop.f32.mrb[0].mxu0
        %1262 = vmatprep.mubr.f32.mxu0 0.0
        %1263 = vmatmul.mubr.f32.gmra.mrb[0].mxu0 %v1135
        %v1264 = vpop.f32.mrb[0].mxu0
        %v1265 = vadd.f32 %v1166, %v1264
        %v1266 = vpop.f32.mrb[0].mxu0
        %1267 = vmatprep.mubr.f32.mxu0 0.0
        %1268 = vmatmul.mubr.f32.gmra.mrb[0].mxu0 %v1136
        %v1269 = vpop.f32.mrb[0].mxu0
        %v1270 = vadd.f32 %v1166, %v1269
        %v1271 = vpop.f32.mrb[0].mxu0
        %1272 = vmatprep.mubr.f32.mxu0 0.0
        %1273 = vmatmul.mubr.f32.gmra.mrb[0].mxu0 %v1137
        %v1274 = vpop.f32.mrb[0].mxu0
        %v1275 = vadd.f32 %v1166, %v1274
        %v1276 = vpop.f32.mrb[0].mxu0
        %1277 = vmatprep.mubr.f32.mxu0 0.0
        %1278 = vmatmul.mubr.f32.gmra.mrb[0].mxu0 %v1138
        %v1279 = vpop.f32.mrb[0].mxu0
        %v1280 = vadd.f32 %v1166, %v1279
        %v1281 = vpop.f32.mrb[0].mxu0
        %1282 = vmatprep.mubr.f32.mxu0 0.0
        %1283 = vmatmul.mubr.f32.gmra.mrb[0].mxu0 %v1139
        %v1284 = vpop.f32.mrb[0].mxu0
        %v1285 = vadd.f32 %v1166, %v1284
        %v1286 = vpop.f32.mrb[0].mxu0
        %1287 = vmatprep.mubr.f32.mxu0 0.0
        %1288 = vmatmul.mubr.f32.gmra.mrb[0].mxu0 %v1140
        %v1289 = vpop.f32.mrb[0].mxu0
        %v1290 = vadd.f32 %v1166, %v1289
        %v1291 = vpop.f32.mrb[0].mxu0
        %1292 = vmatprep.mubr.f32.mxu0 0.0
        %1293 = vmatmul.mubr.f32.gmra.mrb[0].mxu0 %v1141
        %v1294 = vpop.f32.mrb[0].mxu0
        %v1295 = vadd.f32 %v1166, %v1294
        %v1296 = vpop.f32.mrb[0].mxu0
        %1297 = vmatprep.mubr.f32.mxu0 0.0
        %1298 = vmatmul.mubr.f32.gmra.mrb[0].mxu0 %v1142
        %v1299 = vpop.f32.mrb[0].mxu0
        %v1300 = vadd.f32 %v1166, %v1299
        %v1301 = vpop.f32.mrb[0].mxu0
        %1302 = vmatprep.mubr.f32.mxu0 0.0
        %1303 = vmatmul.mubr.f32.gmra.mrb[0].mxu0 %v1143
        %v1304 = vpop.f32.mrb[0].mxu0
        %v1305 = vadd.f32 %v1166, %v1304
        %v1306 = vpop.f32.mrb[0].mxu0
        %1307 = vmatprep.mubr.f32.mxu0 0.0
        %1308 = vmatmul.mubr.f32.gmra.mrb[0].mxu0 %v1144
        %v1309 = vpop.f32.mrb[0].mxu0
        %v1310 = vadd.f32 %v1166, %v1309
        %v1311 = vpop.f32.mrb[0].mxu0
        %1312 = vdwg.mxu0
        %vm1313 = vcmp.gt.f32.partialorder %v1235, 0.0
        %vm1314 = vcmp.gt.f32.partialorder %v1240, 0.0
        %vm1315 = vcmp.gt.f32.partialorder %v1245, 0.0
        %vm1316 = vcmp.gt.f32.partialorder %v1250, 0.0
        %vm1317 = vcmp.gt.f32.partialorder %v1255, 0.0
        %vm1318 = vcmp.gt.f32.partialorder %v1260, 0.0
        %vm1319 = vcmp.gt.f32.partialorder %v1265, 0.0
        %vm1320 = vcmp.gt.f32.partialorder %v1270, 0.0
        %vm1321 = vcmp.gt.f32.partialorder %v1275, 0.0
        %vm1322 = vcmp.gt.f32.partialorder %v1280, 0.0
        %vm1323 = vcmp.gt.f32.partialorder %v1285, 0.0
        %vm1324 = vcmp.gt.f32.partialorder %v1290, 0.0
        %vm1325 = vcmp.gt.f32.partialorder %v1295, 0.0
        %vm1326 = vcmp.gt.f32.partialorder %v1300, 0.0
        %vm1327 = vcmp.gt.f32.partialorder %v1305, 0.0
        %vm1328 = vcmp.gt.f32.partialorder %v1310, 0.0
        %v1329 = vmul.f32 %v1235, 0.01
        %v1330 = vmul.f32 %v1240, 0.01
        %v1331 = vmul.f32 %v1245, 0.01
        %v1332 = vmul.f32 %v1250, 0.01
        %v1333 = vmul.f32 %v1255, 0.01
        %v1334 = vmul.f32 %v1260, 0.01
        %v1335 = vmul.f32 %v1265, 0.01
        %v1336 = vmul.f32 %v1270, 0.01
        %v1337 = vmul.f32 %v1275, 0.01
        %v1338 = vmul.f32 %v1280, 0.01
        %v1339 = vmul.f32 %v1285, 0.01
        %v1340 = vmul.f32 %v1290, 0.01
        %v1341 = vmul.f32 %v1295, 0.01
        %v1342 = vmul.f32 %v1300, 0.01
        %v1343 = vmul.f32 %v1305, 0.01
        %v1344 = vmul.f32 %v1310, 0.01
        %v1345 = vsel %vm1313, %v1235, %v1329
        %v1346 = vsel %vm1314, %v1240, %v1330
        %v1347 = vsel %vm1315, %v1245, %v1331
        %v1348 = vsel %vm1316, %v1250, %v1332
        %v1349 = vsel %vm1317, %v1255, %v1333
        %v1350 = vsel %vm1318, %v1260, %v1334
        %v1351 = vsel %vm1319, %v1265, %v1335
        %v1352 = vsel %vm1320, %v1270, %v1336
        %v1353 = vsel %vm1321, %v1275, %v1337
        %v1354 = vsel %vm1322, %v1280, %v1338
        %v1355 = vsel %vm1323, %v1285, %v1339
        %v1356 = vsel %vm1324, %v1290, %v1340
        %v1357 = vsel %vm1325, %v1295, %v1341
        %v1358 = vsel %vm1326, %v1300, %v1342
        %v1359 = vsel %vm1327, %v1305, %v1343
        %v1360 = vsel %vm1328, %v1310, %v1344
        %v1361 = vld [vmem:[#allocation2] sm:$0xff]
        %v1362 = vld [vmem:[#allocation2 + $0x8] sm:$0xff]
        %v1363 = vld [vmem:[#allocation2 + $0x10] sm:$0xff]
        %v1364 = vld [vmem:[#allocation2 + $0x18] sm:$0xff]
        %v1365 = vld [vmem:[#allocation2 + $0x20] sm:$0xff]
        %v1366 = vld [vmem:[#allocation2 + $0x28] sm:$0xff]
        %v1367 = vld [vmem:[#allocation2 + $0x30] sm:$0xff]
        %v1368 = vld [vmem:[#allocation2 + $0x38] sm:$0xff]
        %v1369 = vld [vmem:[#allocation2 + $0x40] sm:$0xff]
        %v1370 = vld [vmem:[#allocation2 + $0x48] sm:$0xff]
        %v1371 = vld [vmem:[#allocation2 + $0x50] sm:$0xff]
        %v1372 = vld [vmem:[#allocation2 + $0x58] sm:$0xff]
        %v1373 = vld [vmem:[#allocation2 + $0x60] sm:$0xff]
        %v1374 = vld [vmem:[#allocation2 + $0x68] sm:$0xff]
        %v1375 = vld [vmem:[#allocation2 + $0x70] sm:$0xff]
        %v1376 = vld [vmem:[#allocation2 + $0x78] sm:$0xff]
        %v1377 = vld [vmem:[%s8] sm:$0x1]
        %v1379 = vlaneseq
        %v1380 = vshrl.u32 %v1379, 7
        %v1381 = vsub.s32 0, %v1380
        %v1382 = vrot.slane %v1377, %v1381
        %1384 = vmatprep.subr.mxu0 0.0
        %1385 = vmatpush1.msra.mxu0 %v1361
        %1386 = vmatprep.subr.mxu0 0.0
        %1387 = vmatpush1.msra.mxu0 %v1362
        %1388 = vmatprep.subr.mxu0 0.0
        %1389 = vmatpush1.msra.mxu0 %v1363
        %1390 = vmatprep.subr.mxu0 0.0
        %1391 = vmatpush1.msra.mxu0 %v1364
        %1392 = vmatprep.subr.mxu0 0.0
        %1393 = vmatpush1.msra.mxu0 %v1365
        %1394 = vmatprep.subr.mxu0 0.0
        %1395 = vmatpush1.msra.mxu0 %v1366
        %1396 = vmatprep.subr.mxu0 0.0
        %1397 = vmatpush1.msra.mxu0 %v1367
        %1398 = vmatprep.subr.mxu0 0.0
        %1399 = vmatpush1.msra.mxu0 %v1368
        %1400 = vmatprep.subr.mxu0 0.0
        %1401 = vmatpush1.msra.mxu0 %v1369
        %1402 = vmatprep.subr.mxu0 0.0
        %1403 = vmatpush1.msra.mxu0 %v1370
        %1404 = vmatprep.subr.mxu0 0.0
        %1405 = vmatpush1.msra.mxu0 %v1371
        %1406 = vmatprep.subr.mxu0 0.0
        %1407 = vmatpush1.msra.mxu0 %v1372
        %1408 = vmatprep.subr.mxu0 0.0
        %1409 = vmatpush1.msra.mxu0 %v1373
        %1410 = vmatprep.subr.mxu0 0.0
        %1411 = vmatpush1.msra.mxu0 %v1374
        %1412 = vmatprep.subr.mxu0 0.0
        %1413 = vmatpush1.msra.mxu0 %v1375
        %1414 = vmatprep.subr.mxu0 0.0
        %1415 = vmatpush1.msra.mxu0 %v1376
        %1416 = vmatprep.subr.mxu0 0.0
        %1417 = vmatpush1.msra.mxu0 0.0
        %1418 = vmatprep.subr.mxu0 0.0
        %1419 = vmatpush1.msra.mxu0 0.0
        %1420 = vmatprep.subr.mxu0 0.0
        %1421 = vmatpush1.msra.mxu0 0.0
        %1422 = vmatprep.subr.mxu0 0.0
        %1423 = vmatpush1.msra.mxu0 0.0
        %1424 = vmatprep.subr.mxu0 0.0
        %1425 = vmatpush1.msra.mxu0 0.0
        %1426 = vmatprep.subr.mxu0 0.0
        %1427 = vmatpush1.msra.mxu0 0.0
        %1428 = vmatprep.subr.mxu0 0.0
        %1429 = vmatpush1.msra.mxu0 0.0
        %1430 = vmatprep.subr.mxu0 0.0
        %1431 = vmatpush1.msra.mxu0 0.0
        %1432 = vmatprep.subr.mxu0 0.0
        %1433 = vmatpush1.msra.mxu0 0.0
        %1434 = vmatprep.subr.mxu0 0.0
        %1435 = vmatpush1.msra.mxu0 0.0
        %1436 = vmatprep.subr.mxu0 0.0
        %1437 = vmatpush1.msra.mxu0 0.0
        %1438 = vmatprep.subr.mxu0 0.0
        %1439 = vmatpush1.msra.mxu0 0.0
        %1440 = vmatprep.subr.mxu0 0.0
        %1441 = vmatpush1.msra.mxu0 0.0
        %1442 = vmatprep.subr.mxu0 0.0
        %1443 = vmatpush1.msra.mxu0 0.0
        %1444 = vmatprep.subr.mxu0 0.0
        %1445 = vmatpush1.msra.mxu0 0.0
        %1446 = vmatprep.subr.mxu0 0.0
        %1447 = vmatpush1.msra.mxu0 0.0
        %1448 = vmatprep.mubr.f32.mxu0 0.0
        %1449 = vmatmul.mubr.f32.gmra.mrb[0].mxu0 %v1345
        %v1450 = vpop.f32.mrb[0].mxu0
        %v1451 = vadd.f32 %v1382, %v1450
        %v1452 = vpop.f32.mrb[0].mxu0
        %1453 = vmatprep.mubr.f32.mxu0 0.0
        %1454 = vmatmul.mubr.f32.gmra.mrb[0].mxu0 %v1346
        %v1455 = vpop.f32.mrb[0].mxu0
        %v1456 = vadd.f32 %v1382, %v1455
        %v1457 = vpop.f32.mrb[0].mxu0
        %1458 = vmatprep.mubr.f32.mxu0 0.0
        %1459 = vmatmul.mubr.f32.gmra.mrb[0].mxu0 %v1347
        %v1460 = vpop.f32.mrb[0].mxu0
        %v1461 = vadd.f32 %v1382, %v1460
        %v1462 = vpop.f32.mrb[0].mxu0
        %1463 = vmatprep.mubr.f32.mxu0 0.0
        %1464 = vmatmul.mubr.f32.gmra.mrb[0].mxu0 %v1348
        %v1465 = vpop.f32.mrb[0].mxu0
        %v1466 = vadd.f32 %v1382, %v1465
        %v1467 = vpop.f32.mrb[0].mxu0
        %1468 = vmatprep.mubr.f32.mxu0 0.0
        %1469 = vmatmul.mubr.f32.gmra.mrb[0].mxu0 %v1349
        %v1470 = vpop.f32.mrb[0].mxu0
        %v1471 = vadd.f32 %v1382, %v1470
        %v1472 = vpop.f32.mrb[0].mxu0
        %1473 = vmatprep.mubr.f32.mxu0 0.0
        %1474 = vmatmul.mubr.f32.gmra.mrb[0].mxu0 %v1350
        %v1475 = vpop.f32.mrb[0].mxu0
        %v1476 = vadd.f32 %v1382, %v1475
        %v1477 = vpop.f32.mrb[0].mxu0
        %1478 = vmatprep.mubr.f32.mxu0 0.0
        %1479 = vmatmul.mubr.f32.gmra.mrb[0].mxu0 %v1351
        %v1480 = vpop.f32.mrb[0].mxu0
        %v1481 = vadd.f32 %v1382, %v1480
        %v1482 = vpop.f32.mrb[0].mxu0
        %1483 = vmatprep.mubr.f32.mxu0 0.0
        %1484 = vmatmul.mubr.f32.gmra.mrb[0].mxu0 %v1352
        %v1485 = vpop.f32.mrb[0].mxu0
        %v1486 = vadd.f32 %v1382, %v1485
        %v1487 = vpop.f32.mrb[0].mxu0
        %1488 = vmatprep.mubr.f32.mxu0 0.0
        %1489 = vmatmul.mubr.f32.gmra.mrb[0].mxu0 %v1353
        %v1490 = vpop.f32.mrb[0].mxu0
        %v1491 = vadd.f32 %v1382, %v1490
        %v1492 = vpop.f32.mrb[0].mxu0
        %1493 = vmatprep.mubr.f32.mxu0 0.0
        %1494 = vmatmul.mubr.f32.gmra.mrb[0].mxu0 %v1354
        %v1495 = vpop.f32.mrb[0].mxu0
        %v1496 = vadd.f32 %v1382, %v1495
        %v1497 = vpop.f32.mrb[0].mxu0
        %1498 = vmatprep.mubr.f32.mxu0 0.0
        %1499 = vmatmul.mubr.f32.gmra.mrb[0].mxu0 %v1355
        %v1500 = vpop.f32.mrb[0].mxu0
        %v1501 = vadd.f32 %v1382, %v1500
        %v1502 = vpop.f32.mrb[0].mxu0
        %1503 = vmatprep.mubr.f32.mxu0 0.0
        %1504 = vmatmul.mubr.f32.gmra.mrb[0].mxu0 %v1356
        %v1505 = vpop.f32.mrb[0].mxu0
        %v1506 = vadd.f32 %v1382, %v1505
        %v1507 = vpop.f32.mrb[0].mxu0
        %1508 = vmatprep.mubr.f32.mxu0 0.0
        %1509 = vmatmul.mubr.f32.gmra.mrb[0].mxu0 %v1357
        %v1510 = vpop.f32.mrb[0].mxu0
        %v1511 = vadd.f32 %v1382, %v1510
        %v1512 = vpop.f32.mrb[0].mxu0
        %1513 = vmatprep.mubr.f32.mxu0 0.0
        %1514 = vmatmul.mubr.f32.gmra.mrb[0].mxu0 %v1358
        %v1515 = vpop.f32.mrb[0].mxu0
        %v1516 = vadd.f32 %v1382, %v1515
        %v1517 = vpop.f32.mrb[0].mxu0
        %1518 = vmatprep.mubr.f32.mxu0 0.0
        %1519 = vmatmul.mubr.f32.gmra.mrb[0].mxu0 %v1359
        %v1520 = vpop.f32.mrb[0].mxu0
        %v1521 = vadd.f32 %v1382, %v1520
        %v1522 = vpop.f32.mrb[0].mxu0
        %1523 = vmatprep.mubr.f32.mxu0 0.0
        %1524 = vmatmul.mubr.f32.gmra.mrb[0].mxu0 %v1360
        %v1525 = vpop.f32.mrb[0].mxu0
        %v1526 = vadd.f32 %v1382, %v1525
        %v1527 = vpop.f32.mrb[0].mxu0
        %1528 = vdwg.mxu0
        %v1529 = vmax.f32 %v1451, 0.0
        %v1530 = vmax.f32 %v1456, 0.0
        %v1531 = vmax.f32 %v1461, 0.0
        %v1532 = vmax.f32 %v1466, 0.0
        %v1533 = vmax.f32 %v1471, 0.0
        %v1534 = vmax.f32 %v1476, 0.0
        %v1535 = vmax.f32 %v1481, 0.0
        %v1536 = vmax.f32 %v1486, 0.0
        %v1537 = vmax.f32 %v1491, 0.0
        %v1538 = vmax.f32 %v1496, 0.0
        %v1539 = vmax.f32 %v1501, 0.0
        %v1540 = vmax.f32 %v1506, 0.0
        %v1541 = vmax.f32 %v1511, 0.0
        %v1542 = vmax.f32 %v1516, 0.0
        %v1543 = vmax.f32 %v1521, 0.0
        %v1544 = vmax.f32 %v1526, 0.0
        %v1545 = vld [vmem:[#allocation5] sm:$0xff]
        %v1546 = vld [vmem:[#allocation5 + $0x8] sm:$0xff]
        %v1547 = vld [vmem:[#allocation5 + $0x10] sm:$0xff]
        %v1548 = vld [vmem:[#allocation5 + $0x18] sm:$0xff]
        %v1549 = vld [vmem:[#allocation5 + $0x20] sm:$0xff]
        %v1550 = vld [vmem:[#allocation5 + $0x28] sm:$0xff]
        %v1551 = vld [vmem:[#allocation5 + $0x30] sm:$0xff]
        %v1552 = vld [vmem:[#allocation5 + $0x38] sm:$0xff]
        %v1553 = vld [vmem:[#allocation5 + $0x40] sm:$0xff]
        %v1554 = vld [vmem:[#allocation5 + $0x48] sm:$0xff]
        %v1555 = vld [vmem:[#allocation5 + $0x50] sm:$0xff]
        %v1556 = vld [vmem:[#allocation5 + $0x58] sm:$0xff]
        %v1557 = vld [vmem:[#allocation5 + $0x60] sm:$0xff]
        %v1558 = vld [vmem:[#allocation5 + $0x68] sm:$0xff]
        %v1559 = vld [vmem:[#allocation5 + $0x70] sm:$0xff]
        %v1560 = vld [vmem:[#allocation5 + $0x78] sm:$0xff]
        %v1561 = vld [vmem:[%s10] sm:$0x1]
        %v1563 = vlaneseq
        %v1564 = vshrl.u32 %v1563, 7
        %v1565 = vsub.s32 0, %v1564
        %v1566 = vrot.slane %v1561, %v1565
        %1568 = vmatprep.subr.mxu0 0.0
        %1569 = vmatpush1.msra.mxu0 %v1545
        %1570 = vmatprep.subr.mxu0 0.0
        %1571 = vmatpush1.msra.mxu0 %v1546
        %1572 = vmatprep.subr.mxu0 0.0
        %1573 = vmatpush1.msra.mxu0 %v1547
        %1574 = vmatprep.subr.mxu0 0.0
        %1575 = vmatpush1.msra.mxu0 %v1548
        %1576 = vmatprep.subr.mxu0 0.0
        %1577 = vmatpush1.msra.mxu0 %v1549
        %1578 = vmatprep.subr.mxu0 0.0
        %1579 = vmatpush1.msra.mxu0 %v1550
        %1580 = vmatprep.subr.mxu0 0.0
        %1581 = vmatpush1.msra.mxu0 %v1551
        %1582 = vmatprep.subr.mxu0 0.0
        %1583 = vmatpush1.msra.mxu0 %v1552
        %1584 = vmatprep.subr.mxu0 0.0
        %1585 = vmatpush1.msra.mxu0 %v1553
        %1586 = vmatprep.subr.mxu0 0.0
        %1587 = vmatpush1.msra.mxu0 %v1554
        %1588 = vmatprep.subr.mxu0 0.0
        %1589 = vmatpush1.msra.mxu0 %v1555
        %1590 = vmatprep.subr.mxu0 0.0
        %1591 = vmatpush1.msra.mxu0 %v1556
        %1592 = vmatprep.subr.mxu0 0.0
        %1593 = vmatpush1.msra.mxu0 %v1557
        %1594 = vmatprep.subr.mxu0 0.0
        %1595 = vmatpush1.msra.mxu0 %v1558
        %1596 = vmatprep.subr.mxu0 0.0
        %1597 = vmatpush1.msra.mxu0 %v1559
        %1598 = vmatprep.subr.mxu0 0.0
        %1599 = vmatpush1.msra.mxu0 %v1560
        %1600 = vmatprep.subr.mxu0 0.0
        %1601 = vmatpush1.msra.mxu0 0.0
        %1602 = vmatprep.subr.mxu0 0.0
        %1603 = vmatpush1.msra.mxu0 0.0
        %1604 = vmatprep.subr.mxu0 0.0
        %1605 = vmatpush1.msra.mxu0 0.0
        %1606 = vmatprep.subr.mxu0 0.0
        %1607 = vmatpush1.msra.mxu0 0.0
        %1608 = vmatprep.subr.mxu0 0.0
        %1609 = vmatpush1.msra.mxu0 0.0
        %1610 = vmatprep.subr.mxu0 0.0
        %1611 = vmatpush1.msra.mxu0 0.0
        %1612 = vmatprep.subr.mxu0 0.0
        %1613 = vmatpush1.msra.mxu0 0.0
        %1614 = vmatprep.subr.mxu0 0.0
        %1615 = vmatpush1.msra.mxu0 0.0
        %1616 = vmatprep.subr.mxu0 0.0
        %1617 = vmatpush1.msra.mxu0 0.0
        %1618 = vmatprep.subr.mxu0 0.0
        %1619 = vmatpush1.msra.mxu0 0.0
        %1620 = vmatprep.subr.mxu0 0.0
        %1621 = vmatpush1.msra.mxu0 0.0
        %1622 = vmatprep.subr.mxu0 0.0
        %1623 = vmatpush1.msra.mxu0 0.0
        %1624 = vmatprep.subr.mxu0 0.0
        %1625 = vmatpush1.msra.mxu0 0.0
        %1626 = vmatprep.subr.mxu0 0.0
        %1627 = vmatpush1.msra.mxu0 0.0
        %1628 = vmatprep.subr.mxu0 0.0
        %1629 = vmatpush1.msra.mxu0 0.0
        %1630 = vmatprep.subr.mxu0 0.0
        %1631 = vmatpush1.msra.mxu0 0.0
        %1632 = vmatprep.mubr.f32.mxu0 0.0
        %1633 = vmatmul.mubr.f32.gmra.mrb[0].mxu0 %v1529
        %v1634 = vpop.f32.mrb[0].mxu0
        %v1635 = vadd.f32 %v1566, %v1634
        %v1636 = vpop.f32.mrb[0].mxu0
        %1637 = vmatprep.mubr.f32.mxu0 0.0
        %1638 = vmatmul.mubr.f32.gmra.mrb[0].mxu0 %v1530
        %v1639 = vpop.f32.mrb[0].mxu0
        %v1640 = vadd.f32 %v1566, %v1639
        %v1641 = vpop.f32.mrb[0].mxu0
        %1642 = vmatprep.mubr.f32.mxu0 0.0
        %1643 = vmatmul.mubr.f32.gmra.mrb[0].mxu0 %v1531
        %v1644 = vpop.f32.mrb[0].mxu0
        %v1645 = vadd.f32 %v1566, %v1644
        %v1646 = vpop.f32.mrb[0].mxu0
        %1647 = vmatprep.mubr.f32.mxu0 0.0
        %1648 = vmatmul.mubr.f32.gmra.mrb[0].mxu0 %v1532
        %v1649 = vpop.f32.mrb[0].mxu0
        %v1650 = vadd.f32 %v1566, %v1649
        %v1651 = vpop.f32.mrb[0].mxu0
        %1652 = vmatprep.mubr.f32.mxu0 0.0
        %1653 = vmatmul.mubr.f32.gmra.mrb[0].mxu0 %v1533
        %v1654 = vpop.f32.mrb[0].mxu0
        %v1655 = vadd.f32 %v1566, %v1654
        %v1656 = vpop.f32.mrb[0].mxu0
        %1657 = vmatprep.mubr.f32.mxu0 0.0
        %1658 = vmatmul.mubr.f32.gmra.mrb[0].mxu0 %v1534
        %v1659 = vpop.f32.mrb[0].mxu0
        %v1660 = vadd.f32 %v1566, %v1659
        %v1661 = vpop.f32.mrb[0].mxu0
        %1662 = vmatprep.mubr.f32.mxu0 0.0
        %1663 = vmatmul.mubr.f32.gmra.mrb[0].mxu0 %v1535
        %v1664 = vpop.f32.mrb[0].mxu0
        %v1665 = vadd.f32 %v1566, %v1664
        %v1666 = vpop.f32.mrb[0].mxu0
        %1667 = vmatprep.mubr.f32.mxu0 0.0
        %1668 = vmatmul.mubr.f32.gmra.mrb[0].mxu0 %v1536
        %v1669 = vpop.f32.mrb[0].mxu0
        %v1670 = vadd.f32 %v1566, %v1669
        %v1671 = vpop.f32.mrb[0].mxu0
        %1672 = vmatprep.mubr.f32.mxu0 0.0
        %1673 = vmatmul.mubr.f32.gmra.mrb[0].mxu0 %v1537
        %v1674 = vpop.f32.mrb[0].mxu0
        %v1675 = vadd.f32 %v1566, %v1674
        %v1676 = vpop.f32.mrb[0].mxu0
        %1677 = vmatprep.mubr.f32.mxu0 0.0
        %1678 = vmatmul.mubr.f32.gmra.mrb[0].mxu0 %v1538
        %v1679 = vpop.f32.mrb[0].mxu0
        %v1680 = vadd.f32 %v1566, %v1679
        %v1681 = vpop.f32.mrb[0].mxu0
        %1682 = vmatprep.mubr.f32.mxu0 0.0
        %1683 = vmatmul.mubr.f32.gmra.mrb[0].mxu0 %v1539
        %v1684 = vpop.f32.mrb[0].mxu0
        %v1685 = vadd.f32 %v1566, %v1684
        %v1686 = vpop.f32.mrb[0].mxu0
        %1687 = vmatprep.mubr.f32.mxu0 0.0
        %1688 = vmatmul.mubr.f32.gmra.mrb[0].mxu0 %v1540
        %v1689 = vpop.f32.mrb[0].mxu0
        %v1690 = vadd.f32 %v1566, %v1689
        %v1691 = vpop.f32.mrb[0].mxu0
        %1692 = vmatprep.mubr.f32.mxu0 0.0
        %1693 = vmatmul.mubr.f32.gmra.mrb[0].mxu0 %v1541
        %v1694 = vpop.f32.mrb[0].mxu0
        %v1695 = vadd.f32 %v1566, %v1694
        %v1696 = vpop.f32.mrb[0].mxu0
        %1697 = vmatprep.mubr.f32.mxu0 0.0
        %1698 = vmatmul.mubr.f32.gmra.mrb[0].mxu0 %v1542
        %v1699 = vpop.f32.mrb[0].mxu0
        %v1700 = vadd.f32 %v1566, %v1699
        %v1701 = vpop.f32.mrb[0].mxu0
        %1702 = vmatprep.mubr.f32.mxu0 0.0
        %1703 = vmatmul.mubr.f32.gmra.mrb[0].mxu0 %v1543
        %v1704 = vpop.f32.mrb[0].mxu0
        %v1705 = vadd.f32 %v1566, %v1704
        %v1706 = vpop.f32.mrb[0].mxu0
        %1707 = vmatprep.mubr.f32.mxu0 0.0
        %1708 = vmatmul.mubr.f32.gmra.mrb[0].mxu0 %v1544
        %v1709 = vpop.f32.mrb[0].mxu0
        %v1710 = vadd.f32 %v1566, %v1709
        %v1711 = vpop.f32.mrb[0].mxu0
        %1712 = vdwg.mxu0
        %vm1713 = vcmp.gt.f32.partialorder %v1635, 0.0
        %vm1714 = vcmp.gt.f32.partialorder %v1640, 0.0
        %vm1715 = vcmp.gt.f32.partialorder %v1645, 0.0
        %vm1716 = vcmp.gt.f32.partialorder %v1650, 0.0
        %vm1717 = vcmp.gt.f32.partialorder %v1655, 0.0
        %vm1718 = vcmp.gt.f32.partialorder %v1660, 0.0
        %vm1719 = vcmp.gt.f32.partialorder %v1665, 0.0
        %vm1720 = vcmp.gt.f32.partialorder %v1670, 0.0
        %vm1721 = vcmp.gt.f32.partialorder %v1675, 0.0
        %vm1722 = vcmp.gt.f32.partialorder %v1680, 0.0
        %vm1723 = vcmp.gt.f32.partialorder %v1685, 0.0
        %vm1724 = vcmp.gt.f32.partialorder %v1690, 0.0
        %vm1725 = vcmp.gt.f32.partialorder %v1695, 0.0
        %vm1726 = vcmp.gt.f32.partialorder %v1700, 0.0
        %vm1727 = vcmp.gt.f32.partialorder %v1705, 0.0
        %vm1728 = vcmp.gt.f32.partialorder %v1710, 0.0
        %v1729 = vmul.f32 %v1635, 0.01
        %v1730 = vmul.f32 %v1640, 0.01
        %v1731 = vmul.f32 %v1645, 0.01
        %v1732 = vmul.f32 %v1650, 0.01
        %v1733 = vmul.f32 %v1655, 0.01
        %v1734 = vmul.f32 %v1660, 0.01
        %v1735 = vmul.f32 %v1665, 0.01
        %v1736 = vmul.f32 %v1670, 0.01
        %v1737 = vmul.f32 %v1675, 0.01
        %v1738 = vmul.f32 %v1680, 0.01
        %v1739 = vmul.f32 %v1685, 0.01
        %v1740 = vmul.f32 %v1690, 0.01
        %v1741 = vmul.f32 %v1695, 0.01
        %v1742 = vmul.f32 %v1700, 0.01
        %v1743 = vmul.f32 %v1705, 0.01
        %v1744 = vmul.f32 %v1710, 0.01
        %v1745 = vsel %vm1713, %v1635, %v1729
        %v1746 = vsel %vm1714, %v1640, %v1730
        %v1747 = vsel %vm1715, %v1645, %v1731
        %v1748 = vsel %vm1716, %v1650, %v1732
        %v1749 = vsel %vm1717, %v1655, %v1733
        %v1750 = vsel %vm1718, %v1660, %v1734
        %v1751 = vsel %vm1719, %v1665, %v1735
        %v1752 = vsel %vm1720, %v1670, %v1736
        %v1753 = vsel %vm1721, %v1675, %v1737
        %v1754 = vsel %vm1722, %v1680, %v1738
        %v1755 = vsel %vm1723, %v1685, %v1739
        %v1756 = vsel %vm1724, %v1690, %v1740
        %v1757 = vsel %vm1725, %v1695, %v1741
        %v1758 = vsel %vm1726, %v1700, %v1742
        %v1759 = vsel %vm1727, %v1705, %v1743
        %v1760 = vsel %vm1728, %v1710, %v1744
        %v1761 = vld [vmem:[#allocation7] sm:$0xff]
        %v1762 = vld [vmem:[#allocation7 + $0x8] sm:$0xff]
        %v1763 = vld [vmem:[#allocation7 + $0x10] sm:$0xff]
        %v1764 = vld [vmem:[#allocation7 + $0x18] sm:$0xff]
        %v1765 = vld [vmem:[#allocation7 + $0x20] sm:$0xff]
        %v1766 = vld [vmem:[#allocation7 + $0x28] sm:$0xff]
        %v1767 = vld [vmem:[#allocation7 + $0x30] sm:$0xff]
        %v1768 = vld [vmem:[#allocation7 + $0x38] sm:$0xff]
        %v1769 = vld [vmem:[#allocation7 + $0x40] sm:$0xff]
        %v1770 = vld [vmem:[#allocation7 + $0x48] sm:$0xff]
        %v1771 = vld [vmem:[#allocation7 + $0x50] sm:$0xff]
        %v1772 = vld [vmem:[#allocation7 + $0x58] sm:$0xff]
        %v1773 = vld [vmem:[#allocation7 + $0x60] sm:$0xff]
        %v1774 = vld [vmem:[#allocation7 + $0x68] sm:$0xff]
        %v1775 = vld [vmem:[#allocation7 + $0x70] sm:$0xff]
        %v1776 = vld [vmem:[#allocation7 + $0x78] sm:$0xff]
        %v1777 = vld [vmem:[%s12] sm:$0x1]
        %v1779 = vlaneseq
        %v1780 = vshrl.u32 %v1779, 7
        %v1781 = vsub.s32 0, %v1780
        %v1782 = vrot.slane %v1777, %v1781
        %1784 = vmatprep.subr.mxu0 0.0
        %1785 = vmatpush1.msra.mxu0 %v1761
        %1786 = vmatprep.subr.mxu0 0.0
        %1787 = vmatpush1.msra.mxu0 %v1762
        %1788 = vmatprep.subr.mxu0 0.0
        %1789 = vmatpush1.msra.mxu0 %v1763
        %1790 = vmatprep.subr.mxu0 0.0
        %1791 = vmatpush1.msra.mxu0 %v1764
        %1792 = vmatprep.subr.mxu0 0.0
        %1793 = vmatpush1.msra.mxu0 %v1765
        %1794 = vmatprep.subr.mxu0 0.0
        %1795 = vmatpush1.msra.mxu0 %v1766
        %1796 = vmatprep.subr.mxu0 0.0
        %1797 = vmatpush1.msra.mxu0 %v1767
        %1798 = vmatprep.subr.mxu0 0.0
        %1799 = vmatpush1.msra.mxu0 %v1768
        %1800 = vmatprep.subr.mxu0 0.0
        %1801 = vmatpush1.msra.mxu0 %v1769
        %1802 = vmatprep.subr.mxu0 0.0
        %1803 = vmatpush1.msra.mxu0 %v1770
        %1804 = vmatprep.subr.mxu0 0.0
        %1805 = vmatpush1.msra.mxu0 %v1771
        %1806 = vmatprep.subr.mxu0 0.0
        %1807 = vmatpush1.msra.mxu0 %v1772
        %1808 = vmatprep.subr.mxu0 0.0
        %1809 = vmatpush1.msra.mxu0 %v1773
        %1810 = vmatprep.subr.mxu0 0.0
        %1811 = vmatpush1.msra.mxu0 %v1774
        %1812 = vmatprep.subr.mxu0 0.0
        %1813 = vmatpush1.msra.mxu0 %v1775
        %1814 = vmatprep.subr.mxu0 0.0
        %1815 = vmatpush1.msra.mxu0 %v1776
        %1816 = vmatprep.subr.mxu0 0.0
        %1817 = vmatpush1.msra.mxu0 0.0
        %1818 = vmatprep.subr.mxu0 0.0
        %1819 = vmatpush1.msra.mxu0 0.0
        %1820 = vmatprep.subr.mxu0 0.0
        %1821 = vmatpush1.msra.mxu0 0.0
        %1822 = vmatprep.subr.mxu0 0.0
        %1823 = vmatpush1.msra.mxu0 0.0
        %1824 = vmatprep.subr.mxu0 0.0
        %1825 = vmatpush1.msra.mxu0 0.0
        %1826 = vmatprep.subr.mxu0 0.0
        %1827 = vmatpush1.msra.mxu0 0.0
        %1828 = vmatprep.subr.mxu0 0.0
        %1829 = vmatpush1.msra.mxu0 0.0
        %1830 = vmatprep.subr.mxu0 0.0
        %1831 = vmatpush1.msra.mxu0 0.0
        %1832 = vmatprep.subr.mxu0 0.0
        %1833 = vmatpush1.msra.mxu0 0.0
        %1834 = vmatprep.subr.mxu0 0.0
        %1835 = vmatpush1.msra.mxu0 0.0
        %1836 = vmatprep.subr.mxu0 0.0
        %1837 = vmatpush1.msra.mxu0 0.0
        %1838 = vmatprep.subr.mxu0 0.0
        %1839 = vmatpush1.msra.mxu0 0.0
        %1840 = vmatprep.subr.mxu0 0.0
        %1841 = vmatpush1.msra.mxu0 0.0
        %1842 = vmatprep.subr.mxu0 0.0
        %1843 = vmatpush1.msra.mxu0 0.0
        %1844 = vmatprep.subr.mxu0 0.0
        %1845 = vmatpush1.msra.mxu0 0.0
        %1846 = vmatprep.subr.mxu0 0.0
        %1847 = vmatpush1.msra.mxu0 0.0
        %1848 = vmatprep.mubr.f32.mxu0 0.0
        %1849 = vmatmul.mubr.f32.gmra.mrb[0].mxu0 %v1745
        %v1850 = vpop.f32.mrb[0].mxu0
        %v1851 = vadd.f32 %v1782, %v1850
        %v1852 = vpop.f32.mrb[0].mxu0
        %1853 = vmatprep.mubr.f32.mxu0 0.0
        %1854 = vmatmul.mubr.f32.gmra.mrb[0].mxu0 %v1746
        %v1855 = vpop.f32.mrb[0].mxu0
        %v1856 = vadd.f32 %v1782, %v1855
        %v1857 = vpop.f32.mrb[0].mxu0
        %1858 = vmatprep.mubr.f32.mxu0 0.0
        %1859 = vmatmul.mubr.f32.gmra.mrb[0].mxu0 %v1747
        %v1860 = vpop.f32.mrb[0].mxu0
        %v1861 = vadd.f32 %v1782, %v1860
        %v1862 = vpop.f32.mrb[0].mxu0
        %1863 = vmatprep.mubr.f32.mxu0 0.0
        %1864 = vmatmul.mubr.f32.gmra.mrb[0].mxu0 %v1748
        %v1865 = vpop.f32.mrb[0].mxu0
        %v1866 = vadd.f32 %v1782, %v1865
        %v1867 = vpop.f32.mrb[0].mxu0
        %1868 = vmatprep.mubr.f32.mxu0 0.0
        %1869 = vmatmul.mubr.f32.gmra.mrb[0].mxu0 %v1749
        %v1870 = vpop.f32.mrb[0].mxu0
        %v1871 = vadd.f32 %v1782, %v1870
        %v1872 = vpop.f32.mrb[0].mxu0
        %1873 = vmatprep.mubr.f32.mxu0 0.0
        %1874 = vmatmul.mubr.f32.gmra.mrb[0].mxu0 %v1750
        %v1875 = vpop.f32.mrb[0].mxu0
        %v1876 = vadd.f32 %v1782, %v1875
        %v1877 = vpop.f32.mrb[0].mxu0
        %1878 = vmatprep.mubr.f32.mxu0 0.0
        %1879 = vmatmul.mubr.f32.gmra.mrb[0].mxu0 %v1751
        %v1880 = vpop.f32.mrb[0].mxu0
        %v1881 = vadd.f32 %v1782, %v1880
        %v1882 = vpop.f32.mrb[0].mxu0
        %1883 = vmatprep.mubr.f32.mxu0 0.0
        %1884 = vmatmul.mubr.f32.gmra.mrb[0].mxu0 %v1752
        %v1885 = vpop.f32.mrb[0].mxu0
        %v1886 = vadd.f32 %v1782, %v1885
        %v1887 = vpop.f32.mrb[0].mxu0
        %1888 = vmatprep.mubr.f32.mxu0 0.0
        %1889 = vmatmul.mubr.f32.gmra.mrb[0].mxu0 %v1753
        %v1890 = vpop.f32.mrb[0].mxu0
        %v1891 = vadd.f32 %v1782, %v1890
        %v1892 = vpop.f32.mrb[0].mxu0
        %1893 = vmatprep.mubr.f32.mxu0 0.0
        %1894 = vmatmul.mubr.f32.gmra.mrb[0].mxu0 %v1754
        %v1895 = vpop.f32.mrb[0].mxu0
        %v1896 = vadd.f32 %v1782, %v1895
        %v1897 = vpop.f32.mrb[0].mxu0
        %1898 = vmatprep.mubr.f32.mxu0 0.0
        %1899 = vmatmul.mubr.f32.gmra.mrb[0].mxu0 %v1755
        %v1900 = vpop.f32.mrb[0].mxu0
        %v1901 = vadd.f32 %v1782, %v1900
        %v1902 = vpop.f32.mrb[0].mxu0
        %1903 = vmatprep.mubr.f32.mxu0 0.0
        %1904 = vmatmul.mubr.f32.gmra.mrb[0].mxu0 %v1756
        %v1905 = vpop.f32.mrb[0].mxu0
        %v1906 = vadd.f32 %v1782, %v1905
        %v1907 = vpop.f32.mrb[0].mxu0
        %1908 = vmatprep.mubr.f32.mxu0 0.0
        %1909 = vmatmul.mubr.f32.gmra.mrb[0].mxu0 %v1757
        %v1910 = vpop.f32.mrb[0].mxu0
        %v1911 = vadd.f32 %v1782, %v1910
        %v1912 = vpop.f32.mrb[0].mxu0
        %1913 = vmatprep.mubr.f32.mxu0 0.0
        %1914 = vmatmul.mubr.f32.gmra.mrb[0].mxu0 %v1758
        %v1915 = vpop.f32.mrb[0].mxu0
        %v1916 = vadd.f32 %v1782, %v1915
        %v1917 = vpop.f32.mrb[0].mxu0
        %1918 = vmatprep.mubr.f32.mxu0 0.0
        %1919 = vmatmul.mubr.f32.gmra.mrb[0].mxu0 %v1759
        %v1920 = vpop.f32.mrb[0].mxu0
        %v1921 = vadd.f32 %v1782, %v1920
        %v1922 = vpop.f32.mrb[0].mxu0
        %1923 = vmatprep.mubr.f32.mxu0 0.0
        %1924 = vmatmul.mubr.f32.gmra.mrb[0].mxu0 %v1760
        %v1925 = vpop.f32.mrb[0].mxu0
        %v1926 = vadd.f32 %v1782, %v1925
        %v1927 = vpop.f32.mrb[0].mxu0
        %1928 = vdwg.mxu0
        %v1929 = vmax.f32 %v1851, 0.0
        %v1930 = vmax.f32 %v1856, 0.0
        %v1931 = vmax.f32 %v1861, 0.0
        %v1932 = vmax.f32 %v1866, 0.0
        %v1933 = vmax.f32 %v1871, 0.0
        %v1934 = vmax.f32 %v1876, 0.0
        %v1935 = vmax.f32 %v1881, 0.0
        %v1936 = vmax.f32 %v1886, 0.0
        %v1937 = vmax.f32 %v1891, 0.0
        %v1938 = vmax.f32 %v1896, 0.0
        %v1939 = vmax.f32 %v1901, 0.0
        %v1940 = vmax.f32 %v1906, 0.0
        %v1941 = vmax.f32 %v1911, 0.0
        %v1942 = vmax.f32 %v1916, 0.0
        %v1943 = vmax.f32 %v1921, 0.0
        %v1944 = vmax.f32 %v1926, 0.0
        %v1945 = vld [vmem:[#allocation8] sm:$0xff]
        %v1946 = vld [vmem:[#allocation8 + $0x8] sm:$0xff]
        %v1947 = vld [vmem:[#allocation8 + $0x10] sm:$0xff]
        %v1948 = vld [vmem:[#allocation8 + $0x18] sm:$0xff]
        %v1949 = vld [vmem:[#allocation8 + $0x20] sm:$0xff]
        %v1950 = vld [vmem:[#allocation8 + $0x28] sm:$0xff]
        %v1951 = vld [vmem:[#allocation8 + $0x30] sm:$0xff]
        %v1952 = vld [vmem:[#allocation8 + $0x38] sm:$0xff]
        %v1953 = vld [vmem:[#allocation8 + $0x40] sm:$0xff]
        %v1954 = vld [vmem:[#allocation8 + $0x48] sm:$0xff]
        %v1955 = vld [vmem:[#allocation8 + $0x50] sm:$0xff]
        %v1956 = vld [vmem:[#allocation8 + $0x58] sm:$0xff]
        %v1957 = vld [vmem:[#allocation8 + $0x60] sm:$0xff]
        %v1958 = vld [vmem:[#allocation8 + $0x68] sm:$0xff]
        %v1959 = vld [vmem:[#allocation8 + $0x70] sm:$0xff]
        %v1960 = vld [vmem:[#allocation8 + $0x78] sm:$0xff]
        %v1961 = vld [vmem:[%s14] sm:$0x1]
        %v1963 = vlaneseq
        %v1964 = vshrl.u32 %v1963, 7
        %v1965 = vsub.s32 0, %v1964
        %v1966 = vrot.slane %v1961, %v1965
        %1968 = vmatprep.subr.mxu0 0.0
        %1969 = vmatpush1.msra.mxu0 %v1945
        %1970 = vmatprep.subr.mxu0 0.0
        %1971 = vmatpush1.msra.mxu0 %v1946
        %1972 = vmatprep.subr.mxu0 0.0
        %1973 = vmatpush1.msra.mxu0 %v1947
        %1974 = vmatprep.subr.mxu0 0.0
        %1975 = vmatpush1.msra.mxu0 %v1948
        %1976 = vmatprep.subr.mxu0 0.0
        %1977 = vmatpush1.msra.mxu0 %v1949
        %1978 = vmatprep.subr.mxu0 0.0
        %1979 = vmatpush1.msra.mxu0 %v1950
        %1980 = vmatprep.subr.mxu0 0.0
        %1981 = vmatpush1.msra.mxu0 %v1951
        %1982 = vmatprep.subr.mxu0 0.0
        %1983 = vmatpush1.msra.mxu0 %v1952
        %1984 = vmatprep.subr.mxu0 0.0
        %1985 = vmatpush1.msra.mxu0 %v1953
        %1986 = vmatprep.subr.mxu0 0.0
        %1987 = vmatpush1.msra.mxu0 %v1954
        %1988 = vmatprep.subr.mxu0 0.0
        %1989 = vmatpush1.msra.mxu0 %v1955
        %1990 = vmatprep.subr.mxu0 0.0
        %1991 = vmatpush1.msra.mxu0 %v1956
        %1992 = vmatprep.subr.mxu0 0.0
        %1993 = vmatpush1.msra.mxu0 %v1957
        %1994 = vmatprep.subr.mxu0 0.0
        %1995 = vmatpush1.msra.mxu0 %v1958
        %1996 = vmatprep.subr.mxu0 0.0
        %1997 = vmatpush1.msra.mxu0 %v1959
        %1998 = vmatprep.subr.mxu0 0.0
        %1999 = vmatpush1.msra.mxu0 %v1960
        %2000 = vmatprep.subr.mxu0 0.0
        %2001 = vmatpush1.msra.mxu0 0.0
        %2002 = vmatprep.subr.mxu0 0.0
        %2003 = vmatpush1.msra.mxu0 0.0
        %2004 = vmatprep.subr.mxu0 0.0
        %2005 = vmatpush1.msra.mxu0 0.0
        %2006 = vmatprep.subr.mxu0 0.0
        %2007 = vmatpush1.msra.mxu0 0.0
        %2008 = vmatprep.subr.mxu0 0.0
        %2009 = vmatpush1.msra.mxu0 0.0
        %2010 = vmatprep.subr.mxu0 0.0
        %2011 = vmatpush1.msra.mxu0 0.0
        %2012 = vmatprep.subr.mxu0 0.0
        %2013 = vmatpush1.msra.mxu0 0.0
        %2014 = vmatprep.subr.mxu0 0.0
        %2015 = vmatpush1.msra.mxu0 0.0
        %2016 = vmatprep.subr.mxu0 0.0
        %2017 = vmatpush1.msra.mxu0 0.0
        %2018 = vmatprep.subr.mxu0 0.0
        %2019 = vmatpush1.msra.mxu0 0.0
        %2020 = vmatprep.subr.mxu0 0.0
        %2021 = vmatpush1.msra.mxu0 0.0
        %2022 = vmatprep.subr.mxu0 0.0
        %2023 = vmatpush1.msra.mxu0 0.0
        %2024 = vmatprep.subr.mxu0 0.0
        %2025 = vmatpush1.msra.mxu0 0.0
        %2026 = vmatprep.subr.mxu0 0.0
        %2027 = vmatpush1.msra.mxu0 0.0
        %2028 = vmatprep.subr.mxu0 0.0
        %2029 = vmatpush1.msra.mxu0 0.0
        %2030 = vmatprep.subr.mxu0 0.0
        %2031 = vmatpush1.msra.mxu0 0.0
        %2032 = vmatprep.mubr.f32.mxu0 0.0
        %2033 = vmatmul.mubr.f32.gmra.mrb[0].mxu0 %v1929
        %v2034 = vpop.f32.mrb[0].mxu0
        %v2035 = vadd.f32 %v1966, %v2034
        %v2036 = vpop.f32.mrb[0].mxu0
        %2037 = vmatprep.mubr.f32.mxu0 0.0
        %2038 = vmatmul.mubr.f32.gmra.mrb[0].mxu0 %v1930
        %v2039 = vpop.f32.mrb[0].mxu0
        %v2040 = vadd.f32 %v1966, %v2039
        %v2041 = vpop.f32.mrb[0].mxu0
        %2042 = vmatprep.mubr.f32.mxu0 0.0
        %2043 = vmatmul.mubr.f32.gmra.mrb[0].mxu0 %v1931
        %v2044 = vpop.f32.mrb[0].mxu0
        %v2045 = vadd.f32 %v1966, %v2044
        %v2046 = vpop.f32.mrb[0].mxu0
        %2047 = vmatprep.mubr.f32.mxu0 0.0
        %2048 = vmatmul.mubr.f32.gmra.mrb[0].mxu0 %v1932
        %v2049 = vpop.f32.mrb[0].mxu0
        %v2050 = vadd.f32 %v1966, %v2049
        %v2051 = vpop.f32.mrb[0].mxu0
        %2052 = vmatprep.mubr.f32.mxu0 0.0
        %2053 = vmatmul.mubr.f32.gmra.mrb[0].mxu0 %v1933
        %v2054 = vpop.f32.mrb[0].mxu0
        %v2055 = vadd.f32 %v1966, %v2054
        %v2056 = vpop.f32.mrb[0].mxu0
        %2057 = vmatprep.mubr.f32.mxu0 0.0
        %2058 = vmatmul.mubr.f32.gmra.mrb[0].mxu0 %v1934
        %v2059 = vpop.f32.mrb[0].mxu0
        %v2060 = vadd.f32 %v1966, %v2059
        %v2061 = vpop.f32.mrb[0].mxu0
        %2062 = vmatprep.mubr.f32.mxu0 0.0
        %2063 = vmatmul.mubr.f32.gmra.mrb[0].mxu0 %v1935
        %v2064 = vpop.f32.mrb[0].mxu0
        %v2065 = vadd.f32 %v1966, %v2064
        %v2066 = vpop.f32.mrb[0].mxu0
        %2067 = vmatprep.mubr.f32.mxu0 0.0
        %2068 = vmatmul.mubr.f32.gmra.mrb[0].mxu0 %v1936
        %v2069 = vpop.f32.mrb[0].mxu0
        %v2070 = vadd.f32 %v1966, %v2069
        %v2071 = vpop.f32.mrb[0].mxu0
        %2072 = vmatprep.mubr.f32.mxu0 0.0
        %2073 = vmatmul.mubr.f32.gmra.mrb[0].mxu0 %v1937
        %v2074 = vpop.f32.mrb[0].mxu0
        %v2075 = vadd.f32 %v1966, %v2074
        %v2076 = vpop.f32.mrb[0].mxu0
        %2077 = vmatprep.mubr.f32.mxu0 0.0
        %2078 = vmatmul.mubr.f32.gmra.mrb[0].mxu0 %v1938
        %v2079 = vpop.f32.mrb[0].mxu0
        %v2080 = vadd.f32 %v1966, %v2079
        %v2081 = vpop.f32.mrb[0].mxu0
        %2082 = vmatprep.mubr.f32.mxu0 0.0
        %2083 = vmatmul.mubr.f32.gmra.mrb[0].mxu0 %v1939
        %v2084 = vpop.f32.mrb[0].mxu0
        %v2085 = vadd.f32 %v1966, %v2084
        %v2086 = vpop.f32.mrb[0].mxu0
        %2087 = vmatprep.mubr.f32.mxu0 0.0
        %2088 = vmatmul.mubr.f32.gmra.mrb[0].mxu0 %v1940
        %v2089 = vpop.f32.mrb[0].mxu0
        %v2090 = vadd.f32 %v1966, %v2089
        %v2091 = vpop.f32.mrb[0].mxu0
        %2092 = vmatprep.mubr.f32.mxu0 0.0
        %2093 = vmatmul.mubr.f32.gmra.mrb[0].mxu0 %v1941
        %v2094 = vpop.f32.mrb[0].mxu0
        %v2095 = vadd.f32 %v1966, %v2094
        %v2096 = vpop.f32.mrb[0].mxu0
        %2097 = vmatprep.mubr.f32.mxu0 0.0
        %2098 = vmatmul.mubr.f32.gmra.mrb[0].mxu0 %v1942
        %v2099 = vpop.f32.mrb[0].mxu0
        %v2100 = vadd.f32 %v1966, %v2099
        %v2101 = vpop.f32.mrb[0].mxu0
        %2102 = vmatprep.mubr.f32.mxu0 0.0
        %2103 = vmatmul.mubr.f32.gmra.mrb[0].mxu0 %v1943
        %v2104 = vpop.f32.mrb[0].mxu0
        %v2105 = vadd.f32 %v1966, %v2104
        %v2106 = vpop.f32.mrb[0].mxu0
        %2107 = vmatprep.mubr.f32.mxu0 0.0
        %2108 = vmatmul.mubr.f32.gmra.mrb[0].mxu0 %v1944
        %v2109 = vpop.f32.mrb[0].mxu0
        %v2110 = vadd.f32 %v1966, %v2109
        %v2111 = vpop.f32.mrb[0].mxu0
        %2112 = vdwg.mxu0
        %vm2113 = vcmp.gt.f32.partialorder %v2035, 0.0
        %vm2114 = vcmp.gt.f32.partialorder %v2040, 0.0
        %vm2115 = vcmp.gt.f32.partialorder %v2045, 0.0
        %vm2116 = vcmp.gt.f32.partialorder %v2050, 0.0
        %vm2117 = vcmp.gt.f32.partialorder %v2055, 0.0
        %vm2118 = vcmp.gt.f32.partialorder %v2060, 0.0
        %vm2119 = vcmp.gt.f32.partialorder %v2065, 0.0
        %vm2120 = vcmp.gt.f32.partialorder %v2070, 0.0
        %vm2121 = vcmp.gt.f32.partialorder %v2075, 0.0
        %vm2122 = vcmp.gt.f32.partialorder %v2080, 0.0
        %vm2123 = vcmp.gt.f32.partialorder %v2085, 0.0
        %vm2124 = vcmp.gt.f32.partialorder %v2090, 0.0
        %vm2125 = vcmp.gt.f32.partialorder %v2095, 0.0
        %vm2126 = vcmp.gt.f32.partialorder %v2100, 0.0
        %vm2127 = vcmp.gt.f32.partialorder %v2105, 0.0
        %vm2128 = vcmp.gt.f32.partialorder %v2110, 0.0
        %v2129 = vmul.f32 %v2035, 0.01
        %v2130 = vmul.f32 %v2040, 0.01
        %v2131 = vmul.f32 %v2045, 0.01
        %v2132 = vmul.f32 %v2050, 0.01
        %v2133 = vmul.f32 %v2055, 0.01
        %v2134 = vmul.f32 %v2060, 0.01
        %v2135 = vmul.f32 %v2065, 0.01
        %v2136 = vmul.f32 %v2070, 0.01
        %v2137 = vmul.f32 %v2075, 0.01
        %v2138 = vmul.f32 %v2080, 0.01
        %v2139 = vmul.f32 %v2085, 0.01
        %v2140 = vmul.f32 %v2090, 0.01
        %v2141 = vmul.f32 %v2095, 0.01
        %v2142 = vmul.f32 %v2100, 0.01
        %v2143 = vmul.f32 %v2105, 0.01
        %v2144 = vmul.f32 %v2110, 0.01
        %v2145 = vsel %vm2113, %v2035, %v2129
        %v2146 = vsel %vm2114, %v2040, %v2130
        %v2147 = vsel %vm2115, %v2045, %v2131
        %v2148 = vsel %vm2116, %v2050, %v2132
        %v2149 = vsel %vm2117, %v2055, %v2133
        %v2150 = vsel %vm2118, %v2060, %v2134
        %v2151 = vsel %vm2119, %v2065, %v2135
        %v2152 = vsel %vm2120, %v2070, %v2136
        %v2153 = vsel %vm2121, %v2075, %v2137
        %v2154 = vsel %vm2122, %v2080, %v2138
        %v2155 = vsel %vm2123, %v2085, %v2139
        %v2156 = vsel %vm2124, %v2090, %v2140
        %v2157 = vsel %vm2125, %v2095, %v2141
        %v2158 = vsel %vm2126, %v2100, %v2142
        %v2159 = vsel %vm2127, %v2105, %v2143
        %v2160 = vsel %vm2128, %v2110, %v2144
        %v2161 = vld [vmem:[#allocation10] sm:$0xff]
        %v2162 = vld [vmem:[#allocation10 + $0x8] sm:$0xff]
        %v2163 = vld [vmem:[#allocation10 + $0x10] sm:$0xff]
        %v2164 = vld [vmem:[#allocation10 + $0x18] sm:$0xff]
        %v2165 = vld [vmem:[#allocation10 + $0x20] sm:$0xff]
        %v2166 = vld [vmem:[#allocation10 + $0x28] sm:$0xff]
        %v2167 = vld [vmem:[#allocation10 + $0x30] sm:$0xff]
        %v2168 = vld [vmem:[#allocation10 + $0x38] sm:$0xff]
        %v2169 = vld [vmem:[#allocation10 + $0x40] sm:$0xff]
        %v2170 = vld [vmem:[#allocation10 + $0x48] sm:$0xff]
        %v2171 = vld [vmem:[#allocation10 + $0x50] sm:$0xff]
        %v2172 = vld [vmem:[#allocation10 + $0x58] sm:$0xff]
        %v2173 = vld [vmem:[#allocation10 + $0x60] sm:$0xff]
        %v2174 = vld [vmem:[#allocation10 + $0x68] sm:$0xff]
        %v2175 = vld [vmem:[#allocation10 + $0x70] sm:$0xff]
        %v2176 = vld [vmem:[#allocation10 + $0x78] sm:$0xff]
        %v2177 = vld [vmem:[%s16] sm:$0x1]
        %v2179 = vlaneseq
        %v2180 = vshrl.u32 %v2179, 7
        %v2181 = vsub.s32 0, %v2180
        %v2182 = vrot.slane %v2177, %v2181
        %2184 = vmatprep.subr.mxu0 0.0
        %2185 = vmatpush1.msra.mxu0 %v2161
        %2186 = vmatprep.subr.mxu0 0.0
        %2187 = vmatpush1.msra.mxu0 %v2162
        %2188 = vmatprep.subr.mxu0 0.0
        %2189 = vmatpush1.msra.mxu0 %v2163
        %2190 = vmatprep.subr.mxu0 0.0
        %2191 = vmatpush1.msra.mxu0 %v2164
        %2192 = vmatprep.subr.mxu0 0.0
        %2193 = vmatpush1.msra.mxu0 %v2165
        %2194 = vmatprep.subr.mxu0 0.0
        %2195 = vmatpush1.msra.mxu0 %v2166
        %2196 = vmatprep.subr.mxu0 0.0
        %2197 = vmatpush1.msra.mxu0 %v2167
        %2198 = vmatprep.subr.mxu0 0.0
        %2199 = vmatpush1.msra.mxu0 %v2168
        %2200 = vmatprep.subr.mxu0 0.0
        %2201 = vmatpush1.msra.mxu0 %v2169
        %2202 = vmatprep.subr.mxu0 0.0
        %2203 = vmatpush1.msra.mxu0 %v2170
        %2204 = vmatprep.subr.mxu0 0.0
        %2205 = vmatpush1.msra.mxu0 %v2171
        %2206 = vmatprep.subr.mxu0 0.0
        %2207 = vmatpush1.msra.mxu0 %v2172
        %2208 = vmatprep.subr.mxu0 0.0
        %2209 = vmatpush1.msra.mxu0 %v2173
        %2210 = vmatprep.subr.mxu0 0.0
        %2211 = vmatpush1.msra.mxu0 %v2174
        %2212 = vmatprep.subr.mxu0 0.0
        %2213 = vmatpush1.msra.mxu0 %v2175
        %2214 = vmatprep.subr.mxu0 0.0
        %2215 = vmatpush1.msra.mxu0 %v2176
        %2216 = vmatprep.subr.mxu0 0.0
        %2217 = vmatpush1.msra.mxu0 0.0
        %2218 = vmatprep.subr.mxu0 0.0
        %2219 = vmatpush1.msra.mxu0 0.0
        %2220 = vmatprep.subr.mxu0 0.0
        %2221 = vmatpush1.msra.mxu0 0.0
        %2222 = vmatprep.subr.mxu0 0.0
        %2223 = vmatpush1.msra.mxu0 0.0
        %2224 = vmatprep.subr.mxu0 0.0
        %2225 = vmatpush1.msra.mxu0 0.0
        %2226 = vmatprep.subr.mxu0 0.0
        %2227 = vmatpush1.msra.mxu0 0.0
        %2228 = vmatprep.subr.mxu0 0.0
        %2229 = vmatpush1.msra.mxu0 0.0
        %2230 = vmatprep.subr.mxu0 0.0
        %2231 = vmatpush1.msra.mxu0 0.0
        %2232 = vmatprep.subr.mxu0 0.0
        %2233 = vmatpush1.msra.mxu0 0.0
        %2234 = vmatprep.subr.mxu0 0.0
        %2235 = vmatpush1.msra.mxu0 0.0
        %2236 = vmatprep.subr.mxu0 0.0
        %2237 = vmatpush1.msra.mxu0 0.0
        %2238 = vmatprep.subr.mxu0 0.0
        %2239 = vmatpush1.msra.mxu0 0.0
        %2240 = vmatprep.subr.mxu0 0.0
        %2241 = vmatpush1.msra.mxu0 0.0
        %2242 = vmatprep.subr.mxu0 0.0
        %2243 = vmatpush1.msra.mxu0 0.0
        %2244 = vmatprep.subr.mxu0 0.0
        %2245 = vmatpush1.msra.mxu0 0.0
        %2246 = vmatprep.subr.mxu0 0.0
        %2247 = vmatpush1.msra.mxu0 0.0
        %2248 = vmatprep.mubr.f32.mxu0 0.0
        %2249 = vmatmul.mubr.f32.gmra.mrb[0].mxu0 %v2145
        %v2250 = vpop.f32.mrb[0].mxu0
        %v2251 = vadd.f32 %v2182, %v2250
        %v2252 = vpop.f32.mrb[0].mxu0
        %2253 = vmatprep.mubr.f32.mxu0 0.0
        %2254 = vmatmul.mubr.f32.gmra.mrb[0].mxu0 %v2146
        %v2255 = vpop.f32.mrb[0].mxu0
        %v2256 = vadd.f32 %v2182, %v2255
        %v2257 = vpop.f32.mrb[0].mxu0
        %2258 = vmatprep.mubr.f32.mxu0 0.0
        %2259 = vmatmul.mubr.f32.gmra.mrb[0].mxu0 %v2147
        %v2260 = vpop.f32.mrb[0].mxu0
        %v2261 = vadd.f32 %v2182, %v2260
        %v2262 = vpop.f32.mrb[0].mxu0
        %2263 = vmatprep.mubr.f32.mxu0 0.0
        %2264 = vmatmul.mubr.f32.gmra.mrb[0].mxu0 %v2148
        %v2265 = vpop.f32.mrb[0].mxu0
        %v2266 = vadd.f32 %v2182, %v2265
        %v2267 = vpop.f32.mrb[0].mxu0
        %2268 = vmatprep.mubr.f32.mxu0 0.0
        %2269 = vmatmul.mubr.f32.gmra.mrb[0].mxu0 %v2149
        %v2270 = vpop.f32.mrb[0].mxu0
        %v2271 = vadd.f32 %v2182, %v2270
        %v2272 = vpop.f32.mrb[0].mxu0
        %2273 = vmatprep.mubr.f32.mxu0 0.0
        %2274 = vmatmul.mubr.f32.gmra.mrb[0].mxu0 %v2150
        %v2275 = vpop.f32.mrb[0].mxu0
        %v2276 = vadd.f32 %v2182, %v2275
        %v2277 = vpop.f32.mrb[0].mxu0
        %2278 = vmatprep.mubr.f32.mxu0 0.0
        %2279 = vmatmul.mubr.f32.gmra.mrb[0].mxu0 %v2151
        %v2280 = vpop.f32.mrb[0].mxu0
        %v2281 = vadd.f32 %v2182, %v2280
        %v2282 = vpop.f32.mrb[0].mxu0
        %2283 = vmatprep.mubr.f32.mxu0 0.0
        %2284 = vmatmul.mubr.f32.gmra.mrb[0].mxu0 %v2152
        %v2285 = vpop.f32.mrb[0].mxu0
        %v2286 = vadd.f32 %v2182, %v2285
        %v2287 = vpop.f32.mrb[0].mxu0
        %2288 = vmatprep.mubr.f32.mxu0 0.0
        %2289 = vmatmul.mubr.f32.gmra.mrb[0].mxu0 %v2153
        %v2290 = vpop.f32.mrb[0].mxu0
        %v2291 = vadd.f32 %v2182, %v2290
        %v2292 = vpop.f32.mrb[0].mxu0
        %2293 = vmatprep.mubr.f32.mxu0 0.0
        %2294 = vmatmul.mubr.f32.gmra.mrb[0].mxu0 %v2154
        %v2295 = vpop.f32.mrb[0].mxu0
        %v2296 = vadd.f32 %v2182, %v2295
        %v2297 = vpop.f32.mrb[0].mxu0
        %2298 = vmatprep.mubr.f32.mxu0 0.0
        %2299 = vmatmul.mubr.f32.gmra.mrb[0].mxu0 %v2155
        %v2300 = vpop.f32.mrb[0].mxu0
        %v2301 = vadd.f32 %v2182, %v2300
        %v2302 = vpop.f32.mrb[0].mxu0
        %2303 = vmatprep.mubr.f32.mxu0 0.0
        %2304 = vmatmul.mubr.f32.gmra.mrb[0].mxu0 %v2156
        %v2305 = vpop.f32.mrb[0].mxu0
        %v2306 = vadd.f32 %v2182, %v2305
        %v2307 = vpop.f32.mrb[0].mxu0
        %2308 = vmatprep.mubr.f32.mxu0 0.0
        %2309 = vmatmul.mubr.f32.gmra.mrb[0].mxu0 %v2157
        %v2310 = vpop.f32.mrb[0].mxu0
        %v2311 = vadd.f32 %v2182, %v2310
        %v2312 = vpop.f32.mrb[0].mxu0
        %2313 = vmatprep.mubr.f32.mxu0 0.0
        %2314 = vmatmul.mubr.f32.gmra.mrb[0].mxu0 %v2158
        %v2315 = vpop.f32.mrb[0].mxu0
        %v2316 = vadd.f32 %v2182, %v2315
        %v2317 = vpop.f32.mrb[0].mxu0
        %2318 = vmatprep.mubr.f32.mxu0 0.0
        %2319 = vmatmul.mubr.f32.gmra.mrb[0].mxu0 %v2159
        %v2320 = vpop.f32.mrb[0].mxu0
        %v2321 = vadd.f32 %v2182, %v2320
        %v2322 = vpop.f32.mrb[0].mxu0
        %2323 = vmatprep.mubr.f32.mxu0 0.0
        %2324 = vmatmul.mubr.f32.gmra.mrb[0].mxu0 %v2160
        %v2325 = vpop.f32.mrb[0].mxu0
        %v2326 = vadd.f32 %v2182, %v2325
        %v2327 = vpop.f32.mrb[0].mxu0
        %2328 = vdwg.mxu0
        %v2329 = vmax.f32 %v2251, 0.0
        %v2330 = vmax.f32 %v2256, 0.0
        %v2331 = vmax.f32 %v2261, 0.0
        %v2332 = vmax.f32 %v2266, 0.0
        %v2333 = vmax.f32 %v2271, 0.0
        %v2334 = vmax.f32 %v2276, 0.0
        %v2335 = vmax.f32 %v2281, 0.0
        %v2336 = vmax.f32 %v2286, 0.0
        %v2337 = vmax.f32 %v2291, 0.0
        %v2338 = vmax.f32 %v2296, 0.0
        %v2339 = vmax.f32 %v2301, 0.0
        %v2340 = vmax.f32 %v2306, 0.0
        %v2341 = vmax.f32 %v2311, 0.0
        %v2342 = vmax.f32 %v2316, 0.0
        %v2343 = vmax.f32 %v2321, 0.0
        %v2344 = vmax.f32 %v2326, 0.0
        %v2345 = vld [vmem:[#allocation11] sm:$0xff]
        %v2346 = vld [vmem:[#allocation11 + $0x8] sm:$0xff]
        %v2347 = vld [vmem:[#allocation11 + $0x10] sm:$0xff]
        %v2348 = vld [vmem:[#allocation11 + $0x18] sm:$0xff]
        %v2349 = vld [vmem:[#allocation11 + $0x20] sm:$0xff]
        %v2350 = vld [vmem:[#allocation11 + $0x28] sm:$0xff]
        %v2351 = vld [vmem:[#allocation11 + $0x30] sm:$0xff]
        %v2352 = vld [vmem:[#allocation11 + $0x38] sm:$0xff]
        %v2353 = vld [vmem:[#allocation11 + $0x40] sm:$0xff]
        %v2354 = vld [vmem:[#allocation11 + $0x48] sm:$0xff]
        %v2355 = vld [vmem:[#allocation11 + $0x50] sm:$0xff]
        %v2356 = vld [vmem:[#allocation11 + $0x58] sm:$0xff]
        %v2357 = vld [vmem:[#allocation11 + $0x60] sm:$0xff]
        %v2358 = vld [vmem:[#allocation11 + $0x68] sm:$0xff]
        %v2359 = vld [vmem:[#allocation11 + $0x70] sm:$0xff]
        %v2360 = vld [vmem:[#allocation11 + $0x78] sm:$0xff]
        %v2361 = vld [vmem:[%s18] sm:$0x1]
        %v2363 = vlaneseq
        %v2364 = vshrl.u32 %v2363, 7
        %v2365 = vsub.s32 0, %v2364
        %v2366 = vrot.slane %v2361, %v2365
        %2368 = vmatprep.subr.mxu0 0.0
        %2369 = vmatpush1.msra.mxu0 %v2345
        %2370 = vmatprep.subr.mxu0 0.0
        %2371 = vmatpush1.msra.mxu0 %v2346
        %2372 = vmatprep.subr.mxu0 0.0
        %2373 = vmatpush1.msra.mxu0 %v2347
        %2374 = vmatprep.subr.mxu0 0.0
        %2375 = vmatpush1.msra.mxu0 %v2348
        %2376 = vmatprep.subr.mxu0 0.0
        %2377 = vmatpush1.msra.mxu0 %v2349
        %2378 = vmatprep.subr.mxu0 0.0
        %2379 = vmatpush1.msra.mxu0 %v2350
        %2380 = vmatprep.subr.mxu0 0.0
        %2381 = vmatpush1.msra.mxu0 %v2351
        %2382 = vmatprep.subr.mxu0 0.0
        %2383 = vmatpush1.msra.mxu0 %v2352
        %2384 = vmatprep.subr.mxu0 0.0
        %2385 = vmatpush1.msra.mxu0 %v2353
        %2386 = vmatprep.subr.mxu0 0.0
        %2387 = vmatpush1.msra.mxu0 %v2354
        %2388 = vmatprep.subr.mxu0 0.0
        %2389 = vmatpush1.msra.mxu0 %v2355
        %2390 = vmatprep.subr.mxu0 0.0
        %2391 = vmatpush1.msra.mxu0 %v2356
        %2392 = vmatprep.subr.mxu0 0.0
        %2393 = vmatpush1.msra.mxu0 %v2357
        %2394 = vmatprep.subr.mxu0 0.0
        %2395 = vmatpush1.msra.mxu0 %v2358
        %2396 = vmatprep.subr.mxu0 0.0
        %2397 = vmatpush1.msra.mxu0 %v2359
        %2398 = vmatprep.subr.mxu0 0.0
        %2399 = vmatpush1.msra.mxu0 %v2360
        %2400 = vmatprep.subr.mxu0 0.0
        %2401 = vmatpush1.msra.mxu0 0.0
        %2402 = vmatprep.subr.mxu0 0.0
        %2403 = vmatpush1.msra.mxu0 0.0
        %2404 = vmatprep.subr.mxu0 0.0
        %2405 = vmatpush1.msra.mxu0 0.0
        %2406 = vmatprep.subr.mxu0 0.0
        %2407 = vmatpush1.msra.mxu0 0.0
        %2408 = vmatprep.subr.mxu0 0.0
        %2409 = vmatpush1.msra.mxu0 0.0
        %2410 = vmatprep.subr.mxu0 0.0
        %2411 = vmatpush1.msra.mxu0 0.0
        %2412 = vmatprep.subr.mxu0 0.0
        %2413 = vmatpush1.msra.mxu0 0.0
        %2414 = vmatprep.subr.mxu0 0.0
        %2415 = vmatpush1.msra.mxu0 0.0
        %2416 = vmatprep.subr.mxu0 0.0
        %2417 = vmatpush1.msra.mxu0 0.0
        %2418 = vmatprep.subr.mxu0 0.0
        %2419 = vmatpush1.msra.mxu0 0.0
        %2420 = vmatprep.subr.mxu0 0.0
        %2421 = vmatpush1.msra.mxu0 0.0
        %2422 = vmatprep.subr.mxu0 0.0
        %2423 = vmatpush1.msra.mxu0 0.0
        %2424 = vmatprep.subr.mxu0 0.0
        %2425 = vmatpush1.msra.mxu0 0.0
        %2426 = vmatprep.subr.mxu0 0.0
        %2427 = vmatpush1.msra.mxu0 0.0
        %2428 = vmatprep.subr.mxu0 0.0
        %2429 = vmatpush1.msra.mxu0 0.0
        %2430 = vmatprep.subr.mxu0 0.0
        %2431 = vmatpush1.msra.mxu0 0.0
        %2432 = vmatprep.mubr.f32.mxu0 0.0
        %2433 = vmatmul.mubr.f32.gmra.mrb[0].mxu0 %v2329
        %v2434 = vpop.f32.mrb[0].mxu0
        %v2435 = vadd.f32 %v2366, %v2434
        %v2436 = vpop.f32.mrb[0].mxu0
        %2437 = vmatprep.mubr.f32.mxu0 0.0
        %2438 = vmatmul.mubr.f32.gmra.mrb[0].mxu0 %v2330
        %v2439 = vpop.f32.mrb[0].mxu0
        %v2440 = vadd.f32 %v2366, %v2439
        %v2441 = vpop.f32.mrb[0].mxu0
        %2442 = vmatprep.mubr.f32.mxu0 0.0
        %2443 = vmatmul.mubr.f32.gmra.mrb[0].mxu0 %v2331
        %v2444 = vpop.f32.mrb[0].mxu0
        %v2445 = vadd.f32 %v2366, %v2444
        %v2446 = vpop.f32.mrb[0].mxu0
        %2447 = vmatprep.mubr.f32.mxu0 0.0
        %2448 = vmatmul.mubr.f32.gmra.mrb[0].mxu0 %v2332
        %v2449 = vpop.f32.mrb[0].mxu0
        %v2450 = vadd.f32 %v2366, %v2449
        %v2451 = vpop.f32.mrb[0].mxu0
        %2452 = vmatprep.mubr.f32.mxu0 0.0
        %2453 = vmatmul.mubr.f32.gmra.mrb[0].mxu0 %v2333
        %v2454 = vpop.f32.mrb[0].mxu0
        %v2455 = vadd.f32 %v2366, %v2454
        %v2456 = vpop.f32.mrb[0].mxu0
        %2457 = vmatprep.mubr.f32.mxu0 0.0
        %2458 = vmatmul.mubr.f32.gmra.mrb[0].mxu0 %v2334
        %v2459 = vpop.f32.mrb[0].mxu0
        %v2460 = vadd.f32 %v2366, %v2459
        %v2461 = vpop.f32.mrb[0].mxu0
        %2462 = vmatprep.mubr.f32.mxu0 0.0
        %2463 = vmatmul.mubr.f32.gmra.mrb[0].mxu0 %v2335
        %v2464 = vpop.f32.mrb[0].mxu0
        %v2465 = vadd.f32 %v2366, %v2464
        %v2466 = vpop.f32.mrb[0].mxu0
        %2467 = vmatprep.mubr.f32.mxu0 0.0
        %2468 = vmatmul.mubr.f32.gmra.mrb[0].mxu0 %v2336
        %v2469 = vpop.f32.mrb[0].mxu0
        %v2470 = vadd.f32 %v2366, %v2469
        %v2471 = vpop.f32.mrb[0].mxu0
        %2472 = vmatprep.mubr.f32.mxu0 0.0
        %2473 = vmatmul.mubr.f32.gmra.mrb[0].mxu0 %v2337
        %v2474 = vpop.f32.mrb[0].mxu0
        %v2475 = vadd.f32 %v2366, %v2474
        %v2476 = vpop.f32.mrb[0].mxu0
        %2477 = vmatprep.mubr.f32.mxu0 0.0
        %2478 = vmatmul.mubr.f32.gmra.mrb[0].mxu0 %v2338
        %v2479 = vpop.f32.mrb[0].mxu0
        %v2480 = vadd.f32 %v2366, %v2479
        %v2481 = vpop.f32.mrb[0].mxu0
        %2482 = vmatprep.mubr.f32.mxu0 0.0
        %2483 = vmatmul.mubr.f32.gmra.mrb[0].mxu0 %v2339
        %v2484 = vpop.f32.mrb[0].mxu0
        %v2485 = vadd.f32 %v2366, %v2484
        %v2486 = vpop.f32.mrb[0].mxu0
        %2487 = vmatprep.mubr.f32.mxu0 0.0
        %2488 = vmatmul.mubr.f32.gmra.mrb[0].mxu0 %v2340
        %v2489 = vpop.f32.mrb[0].mxu0
        %v2490 = vadd.f32 %v2366, %v2489
        %v2491 = vpop.f32.mrb[0].mxu0
        %2492 = vmatprep.mubr.f32.mxu0 0.0
        %2493 = vmatmul.mubr.f32.gmra.mrb[0].mxu0 %v2341
        %v2494 = vpop.f32.mrb[0].mxu0
        %v2495 = vadd.f32 %v2366, %v2494
        %v2496 = vpop.f32.mrb[0].mxu0
        %2497 = vmatprep.mubr.f32.mxu0 0.0
        %2498 = vmatmul.mubr.f32.gmra.mrb[0].mxu0 %v2342
        %v2499 = vpop.f32.mrb[0].mxu0
        %v2500 = vadd.f32 %v2366, %v2499
        %v2501 = vpop.f32.mrb[0].mxu0
        %2502 = vmatprep.mubr.f32.mxu0 0.0
        %2503 = vmatmul.mubr.f32.gmra.mrb[0].mxu0 %v2343
        %v2504 = vpop.f32.mrb[0].mxu0
        %v2505 = vadd.f32 %v2366, %v2504
        %v2506 = vpop.f32.mrb[0].mxu0
        %2507 = vmatprep.mubr.f32.mxu0 0.0
        %2508 = vmatmul.mubr.f32.gmra.mrb[0].mxu0 %v2344
        %v2509 = vpop.f32.mrb[0].mxu0
        %v2510 = vadd.f32 %v2366, %v2509
        %v2511 = vpop.f32.mrb[0].mxu0
        %2512 = vdwg.mxu0
        %2513 = vst [vmem:[%s684] sm:$0xff] %v2435
        %2514 = vst [vmem:[%s684 + $0x8] sm:$0xff] %v2440
        %2515 = vst [vmem:[%s684 + $0x10] sm:$0xff] %v2445
        %2516 = vst [vmem:[%s684 + $0x18] sm:$0xff] %v2450
        %2517 = vst [vmem:[%s684 + $0x20] sm:$0xff] %v2455
        %2518 = vst [vmem:[%s684 + $0x28] sm:$0xff] %v2460
        %2519 = vst [vmem:[%s684 + $0x30] sm:$0xff] %v2465
        %2520 = vst [vmem:[%s684 + $0x38] sm:$0xff] %v2470
        %2521 = vst [vmem:[%s684 + $0x40] sm:$0xff] %v2475
        %2522 = vst [vmem:[%s684 + $0x48] sm:$0xff] %v2480
        %2523 = vst [vmem:[%s684 + $0x50] sm:$0xff] %v2485
        %2524 = vst [vmem:[%s684 + $0x58] sm:$0xff] %v2490
        %2525 = vst [vmem:[%s684 + $0x60] sm:$0xff] %v2495
        %2526 = vst [vmem:[%s684 + $0x68] sm:$0xff] %v2500
        %2527 = vst [vmem:[%s684 + $0x70] sm:$0xff] %v2505
        %2528 = vst [vmem:[%s684 + $0x78] sm:$0xff] %v2510
        %s2529 = sand.u32 %s449, 1
        %s2530 = scalar_lea.sflag [#allocation4], %s2529
        %s2531 = sand.u32 %s449, 1
        %s2532 = smul.addr %s2531, 128
        %s2533 = scalar_lea.vmem [#allocation13], %s2532
        // Predicated region
        $region121: #{tpu_custom_call.1} parent=95 // pred_check
          %p2534 = pneg %p459
        $region122: #{tpu_custom_call.1} parent=95 // pred_check_branch
          %2536 = sbr.rel (%p2534) target = $region124
        $region123: #{tpu_custom_call.1} parent=95 // pred_region
          %s2537 = smul.u32 16, %s37
          %s2539 = ssub.s32 2048, 2048
          %2540 = vsyncadd %s2530, %s2539
          %s2541 = smul.addr %s2537, 128
          %s2542 = scalar_lea.hbm %s19, %s2541
          %s2543 = sshll.u32 %s2533, 4
          %s2544 = int_to_ptr.vmem [resolvable:$true] %s2543
          %2549 = dma.vmem_to_hbm [thread:$0]  %s2544, 2048, %s2542, %s2530, 128, 128, 8
        $region124: #{tpu_custom_call.1} parent=95 // pred_fallthru
          _
      $region96: #{tpu_custom_call.1} parent=5 // pred_fallthru
        _
      %p2550 = scmp.le.s32.totalorder 2, %s32
      // Predicated region
      $region125: #{tpu_custom_call.1} parent=5 // pred_check
        %p2551 = pneg %p2550
      $region126: #{tpu_custom_call.1} parent=5 // pred_check_branch
        %2553 = sbr.rel (%p2551) target = $region128
      $region127: #{tpu_custom_call.1} parent=5 // pred_region
        %s2554 = ssub.s32 %s32, 2
        // Predicated region
        $region129: #{tpu_custom_call.1} parent=127 // pred_check
          %p2555 = pneg %p465
        $region130: #{tpu_custom_call.1} parent=127 // pred_check_branch
          %2557 = sbr.rel (%p2555) target = $region132
        $region131: #{tpu_custom_call.1} parent=127 // pred_region
          %s2558 = sand.u32 %s450, 1
          %s2559 = scalar_lea.sflag [#allocation4], %s2558
          %s2560 = sand.u32 %s450, 1
          %s2561 = smul.addr %s2560, 128
          %s2562 = scalar_lea.vmem [#allocation13], %s2561
          %2563 = dma.done %s2559, 2048
        $region132: #{tpu_custom_call.1} parent=127 // pred_fallthru
          _
      $region128: #{tpu_custom_call.1} parent=5 // pred_fallthru
        _
    $region6: #{tpu_custom_call.1} parent=1 // loop_footer
      %s36 = sadd.s32 1, %s32
    $region7: #{tpu_custom_call.1} parent=1 // loop_footer_branch
      %31 = sbr.rel target = $region3
    $region8: #{tpu_custom_call.1} parent=1 // loop_exit
      _
    %2564 = vsyncpa [#allocation3], 1
    %s2565 = scalar_lea.sflag [#allocation3], 1
    %2566 = vsyncpa %s2565, 1
    %2567 = vsyncpa [#allocation6], 1
    %2568 = vsyncpa [#allocation9], 1
    %2569 = vsyncpa [#allocation12], 1
    %2570 = vsyncpa [#allocation4], 1
    %s2571 = scalar_lea.sflag [#allocation4], 1
    %2572 = vsyncpa %s2571, 1

</llo_original>
